<compile_context>
chip_gen: v6e
topology: v6e:2x2x1
jax: 0.10.0
libtpu: 0.0.40
codegen_flags: <defaults>
</compile_context>

<pallas_src>
import jax
import jax.numpy as jnp
import numpy as np
from jax.experimental import pallas as pl
from jax.experimental.pallas import tpu as pltpu


# --------------------------------------------------------------------------
# Fused kernel: all layers + decoder, grid over time chunks.
# --------------------------------------------------------------------------
def _make_fused_kernel(num_layers, hidden_size, chunk, batch):
    L, H, Tc, B = num_layers, hidden_size, chunk, batch

    def kernel(*refs):
        x_ref, h0_ref = refs[0], refs[1]
        w_refs = refs[2:2 + L]                 # fused (D_in, 3H) per layer
        bm_refs = refs[2 + L:2 + 2 * L]        # packed (5, H): bz,br,bh,mz,mr
        dec_w_ref = refs[2 + 2 * L]            # (H, O)
        dec_b_ref = refs[3 + 2 * L]            # (1, O)
        out_ref = refs[4 + 2 * L]              # (Tc*B, O) output block
        hT_ref = refs[5 + 2 * L]               # (L, B, H) final hidden
        h_scratch = refs[6 + 2 * L]            # VMEM (L, B, H) f32 carry

        c = pl.program_id(0)

        @pl.when(c == 0)
        def _init():
            h_scratch[...] = h0_ref[...].astype(jnp.float32)

        # Layer-0 input for the whole chunk; rows already in (t, b) order.
        seq = x_ref[...].astype(jnp.float32)                  # (Tc*B, D_in)

        final_hs = []
        for l in range(L):
            w3 = w_refs[l][...].astype(jnp.float32)           # (D_in, 3H)
            bm = bm_refs[l][...].astype(jnp.float32)          # (5, H)
            bz, br, bh = bm[0:1], bm[1:2], bm[2:3]
            mz, mr = bm[3:4], bm[4:5]

            # ONE batched MXU matmul per layer per chunk: all Tc timesteps,
            # all three gates (input projections are hidden-state independent).
            pre = jnp.dot(seq, w3, preferred_element_type=jnp.float32)
            pre_z = pre[:, 0 * H:1 * H] + bz                  # (Tc*B, H)
            pre_r = pre[:, 1 * H:2 * H] + br
            pre_h = pre[:, 2 * H:3 * H] + bh

            h = h_scratch[l]                                  # (B, H) f32
            outs = []
            for t in range(Tc):                               # VPU/EUP only
                rows = slice(t * B, (t + 1) * B)
                z = jax.nn.sigmoid(pre_z[rows] + mz * h)
                r = jnp.tanh(pre_r[rows] + mr * h) + 1.0
                h = z * h + (1.0 - z) * jnp.tanh(pre_h[rows] + r * h)
                outs.append(h)

            h_scratch[l] = h                                  # carry to next chunk
            final_hs.append(h)
            seq = jnp.concatenate(outs, axis=0)               # (Tc*B, H)

        # Final hidden state: resident output block, only write on last chunk.
        @pl.when(c == pl.num_programs(0) - 1)
        def _write_hT():
            for l in range(L):
                hT_ref[l] = final_hs[l].astype(hT_ref.dtype)

        # Decoder for the whole chunk: one (Tc*B, H) @ (H, O) matmul and one
        # dense block store (rows in (t, b) order -> matches (T, B) flatten).
        y = jnp.dot(seq, dec_w_ref[...], preferred_element_type=jnp.float32)
        out_ref[...] = (y + dec_b_ref[...]).astype(out_ref.dtype)

    return kernel


def _pick_chunk(T, max_chunk=32):
    # Largest divisor of T that is <= max_chunk (the elementwise time loop is
    # fully unrolled inside the kernel; the matmuls batch over the chunk).
    for c in range(min(T, max_chunk), 0, -1):
        if T % c == 0:
            return c
    return 1


# --------------------------------------------------------------------------
# RNNModel forward (embedding=Identity, dropout=0.0, sequential_output=True)
# --------------------------------------------------------------------------
def rnn_model_forward(x, hidden, params, *, max_chunk=32):
    """x: (T, B, input_size); hidden: [[h_l (B,H)] for each layer]."""
    # TODO(synk): embedding path (num_embeds is not None) and dropout>0 are
    # not implemented; defaults (Identity embedding, dropout=0.0) are used.
    T, B, D = x.shape
    layers = params["layers"]
    L = len(layers)
    H = layers[0]["wz"].shape[1]
    O = params["dec_w"].shape[1]

    Tc = _pick_chunk(T, max_chunk)
    num_chunks = T // Tc

    # Fuse per-gate weights into (D_in, 3H); pack the 5 small vectors -> (5, H).
    w3 = [jnp.concatenate([p["wz"], p["wr"], p["wh"]], axis=1) for p in layers]
    bm = [jnp.concatenate([p["bz"], p["br"], p["bh"], p["mz"], p["mr"]], axis=0)
          for p in layers]
    h0 = jnp.stack([hidden[l][0] for l in range(L)], axis=0)      # (L, B, H)

    x_flat = x.reshape(T * B, D)     # (t, b) row order, flattened once outside

    full2 = lambda c: (0, 0)
    full3 = lambda c: (0, 0, 0)

    in_specs = [
        pl.BlockSpec((Tc * B, D), lambda c: (c, 0)),              # x chunk
        pl.BlockSpec((L, B, H), full3),                           # h0
    ]
    in_specs += [pl.BlockSpec(w.shape, full2) for w in w3]        # fused weights
    in_specs += [pl.BlockSpec(v.shape, full2) for v in bm]        # packed vectors
    in_specs += [pl.BlockSpec((H, O), full2),                     # dec_w
                 pl.BlockSpec((1, O), full2)]                     # dec_b

    out_specs = [
        pl.BlockSpec((Tc * B, O), lambda c: (c, 0)),   # decoded chunk (dense)
        pl.BlockSpec((L, B, H), full3),                # final hidden (resident)
    ]

    grid_spec = pltpu.PrefetchScalarGridSpec(
        num_scalar_prefetch=0,
        grid=(num_chunks,),
        in_specs=in_specs,
        out_specs=out_specs,
        scratch_shapes=[pltpu.VMEM((L, B, H), jnp.float32)],
    )

    kernel = _make_fused_kernel(L, H, Tc, B)
    out_flat, hT = pl.pallas_call(
        kernel,
        out_shape=(jax.ShapeDtypeStruct((T * B, O), x.dtype),
                   jax.ShapeDtypeStruct((L, B, H), x.dtype)),
        grid_spec=grid_spec,
        compiler_params=pltpu.CompilerParams(
            dimension_semantics=("arbitrary",)),       # sequential recurrence
    )(x_flat, h0, *w3, *bm, params["dec_w"], params["dec_b"])

    out = out_flat.reshape(T, B, O)
    out_hiddens = [[hT[l]] for l in range(L)]
    return out, out_hiddens


# --------------------------------------------------------------------------
# Deterministic parameter init + pure-JAX reference for verification.
# --------------------------------------------------------------------------
def init_params(key, input_size, hidden_size, output_size, num_layers):
    layers = []
    for i in range(num_layers):
        d_in = input_size if i == 0 else hidden_size
        k = 1.0 / np.sqrt(d_in)
        key, *sub = jax.random.split(key, 7)
        layers.append(dict(
            wz=jax.random.uniform(sub[0], (d_in, hidden_size), jnp.float32, -k, k),
            wr=jax.random.uniform(sub[1], (d_in, hidden_size), jnp.float32, -k, k),
            wh=jax.random.uniform(sub[2], (d_in, hidden_size), jnp.float32, -k, k),
            bz=jax.random.uniform(sub[3], (1, hidden_size), jnp.float32, -k, k),
            br=jax.random.uniform(sub[4], (1, hidden_size), jnp.float32, -k, k),
            bh=jax.random.uniform(sub[5], (1, hidden_size), jnp.float32, -k, k),
            mz=jnp.ones((1, hidden_size), jnp.float32),
            mr=jnp.ones((1, hidden_size), jnp.float32),
        ))
    kd = 1.0 / np.sqrt(hidden_size)
    key, k1, k2 = jax.random.split(key, 3)
    return dict(
        layers=layers,
        dec_w=jax.random.uniform(k1, (hidden_size, output_size), jnp.float32, -kd, kd),
        dec_b=jax.random.uniform(k2, (1, output_size), jnp.float32, -kd, kd),
    )


def ref_forward(x, hidden, params):
    def step(p, h, xt):
        z = jax.nn.sigmoid(xt @ p["wz"] + p["bz"] + p["mz"] * h)
        r = jnp.tanh(xt @ p["wr"] + p["br"] + p["mr"] * h) + 1.0
        return z * h + (1.0 - z) * jnp.tanh(xt @ p["wh"] + p["bh"] + r * h)

    seq = x
    hiddens = []
    for li, p in enumerate(params["layers"]):
        h = hidden[li][0]
        outs = []
        for t in range(seq.shape[0]):
            h = step(p, h, seq[t])
            outs.append(h)
        seq = jnp.stack(outs)
        hiddens.append([h])
    return seq @ params["dec_w"] + params["dec_b"], hiddens


if __name__ == "__main__":
    input_size, hidden_size, output_size, num_layers = 16, 32, 8, 2
    T, B = 8, 4

    key = jax.random.PRNGKey(0)
    key, kx = jax.random.split(key)
    x = jax.random.normal(kx, (T, B, input_size), jnp.float32)
    params = init_params(key, input_size, hidden_size, output_size, num_layers)
    # init_hidden(batch_size): one zero hidden tensor per layer.
    hidden = [[jnp.zeros((B, hidden_size), jnp.float32)] for _ in range(num_layers)]

    out, out_hidden = rnn_model_forward(x, hidden, params)
    out = jax.block_until_ready(out)
    for h in out_hidden:
        jax.block_until_ready(h[0])

    ref_out, ref_hidden = ref_forward(x, hidden, params)
    np.testing.assert_allclose(np.asarray(out), np.asarray(ref_out),
                               rtol=1e-3, atol=1e-4)
    for li in range(num_layers):
        np.testing.assert_allclose(np.asarray(out_hidden[li][0]),
                                   np.asarray(ref_hidden[li][0]),
                                   rtol=1e-3, atol=1e-4)

    assert out.shape == (T, B, output_size)
    print("KERNEL_OK")
</pallas_src>

<mosaic_0001>
module attributes {stable_mosaic.version = 11 : i64} {
  func.func @kernel(%arg0: i32, %arg1: memref<32x16xf32, #tpu.memory_space<vmem>>, %arg2: memref<2x4x32xf32, #tpu.memory_space<vmem>>, %arg3: memref<16x96xf32, #tpu.memory_space<vmem>>, %arg4: memref<32x96xf32, #tpu.memory_space<vmem>>, %arg5: memref<5x32xf32, #tpu.memory_space<vmem>>, %arg6: memref<5x32xf32, #tpu.memory_space<vmem>>, %arg7: memref<32x8xf32, #tpu.memory_space<vmem>>, %arg8: memref<1x8xf32, #tpu.memory_space<vmem>>, %arg9: memref<32x8xf32, #tpu.memory_space<vmem>>, %arg10: memref<2x4x32xf32, #tpu.memory_space<vmem>>, %arg11: memref<2x4x32xf32, #tpu.memory_space<vmem>>) attributes {dimension_semantics = [#tpu.dimension_semantics<arbitrary>], iteration_bounds = array<i64: 1>, scalar_prefetch = 0 : i64, scratch_operands = 1 : i64, tpu.core_type = #tpu.core_type<tc>, window_params = [{transform_indices = @transform_0, window_bounds = array<i64: 32, 16>}, {pipeline_mode = #tpu.pipeline_mode<synchronous>, transform_indices = @transform_1, window_bounds = array<i64: 2, 4, 32>}, {pipeline_mode = #tpu.pipeline_mode<synchronous>, transform_indices = @transform_2, window_bounds = array<i64: 16, 96>}, {pipeline_mode = #tpu.pipeline_mode<synchronous>, transform_indices = @transform_3, window_bounds = array<i64: 32, 96>}, {pipeline_mode = #tpu.pipeline_mode<synchronous>, transform_indices = @transform_4, window_bounds = array<i64: 5, 32>}, {pipeline_mode = #tpu.pipeline_mode<synchronous>, transform_indices = @transform_5, window_bounds = array<i64: 5, 32>}, {pipeline_mode = #tpu.pipeline_mode<synchronous>, transform_indices = @transform_6, window_bounds = array<i64: 32, 8>}, {pipeline_mode = #tpu.pipeline_mode<synchronous>, transform_indices = @transform_7, window_bounds = array<i64: 1, 8>}, {transform_indices = @transform_8, window_bounds = array<i64: 32, 8>}, {pipeline_mode = #tpu.pipeline_mode<synchronous>, transform_indices = @transform_9, window_bounds = array<i64: 2, 4, 32>}]} {
    %c0_i32 = arith.constant 0 : i32
    %0 = arith.cmpi eq, %arg0, %c0_i32 : i32
    %1 = arith.extui %0 : i1 to i32
    %c0_i32_0 = arith.constant 0 : i32
    %2 = arith.cmpi ne, %1, %c0_i32_0 : i32
    scf.if %2 {
      %c0_79 = arith.constant 0 : index
      %c0_80 = arith.constant 0 : index
      %c0_81 = arith.constant 0 : index
      %459 = vector.load %arg2[%c0_79, %c0_80, %c0_81] : memref<2x4x32xf32, #tpu.memory_space<vmem>>, vector<2x4x32xf32>
      %c0_82 = arith.constant 0 : index
      %c0_83 = arith.constant 0 : index
      %c0_84 = arith.constant 0 : index
      %460 = vector.load %arg11[%c0_82, %c0_83, %c0_84] : memref<2x4x32xf32, #tpu.memory_space<vmem>>, vector<2x4x32xf32>
      tpu.vector_store %arg11[%c0_82, %c0_83, %c0_84], %459 {strides = array<i32>} : memref<2x4x32xf32, #tpu.memory_space<vmem>>, vector<2x4x32xf32>,
    } else {
    }
    %c0 = arith.constant 0 : index
    %c0_1 = arith.constant 0 : index
    %3 = vector.load %arg1[%c0, %c0_1] : memref<32x16xf32, #tpu.memory_space<vmem>>, vector<32x16xf32>
    %c0_2 = arith.constant 0 : index
    %c0_3 = arith.constant 0 : index
    %4 = vector.load %arg3[%c0_2, %c0_3] : memref<16x96xf32, #tpu.memory_space<vmem>>, vector<16x96xf32>
    %c0_4 = arith.constant 0 : index
    %c0_5 = arith.constant 0 : index
    %5 = vector.load %arg5[%c0_4, %c0_5] : memref<5x32xf32, #tpu.memory_space<vmem>>, vector<5x32xf32>
    %6 = vector.extract_strided_slice %5 {offsets = [0, 0], sizes = [1, 32], strides = [1, 1]} : vector<5x32xf32> to vector<1x32xf32>
    %7 = vector.extract_strided_slice %5 {offsets = [1, 0], sizes = [1, 32], strides = [1, 1]} : vector<5x32xf32> to vector<1x32xf32>
    %8 = vector.extract_strided_slice %5 {offsets = [2, 0], sizes = [1, 32], strides = [1, 1]} : vector<5x32xf32> to vector<1x32xf32>
    %9 = vector.extract_strided_slice %5 {offsets = [3, 0], sizes = [1, 32], strides = [1, 1]} : vector<5x32xf32> to vector<1x32xf32>
    %10 = vector.extract_strided_slice %5 {offsets = [4, 0], sizes = [1, 32], strides = [1, 1]} : vector<5x32xf32> to vector<1x32xf32>
    %cst = arith.constant dense<0.000000e+00> : vector<32x96xf32>
    %11 = tpu.matmul %3, %4, %cst {dimension_numbers = #tpu.dot_dimension_numbers<[1], [0], [0], [1], [0, 0, 1, 1], [], []>} : vector<32x16xf32>, vector<16x96xf32>, vector<32x96xf32> -> vector<32x96xf32>
    %12 = vector.extract_strided_slice %11 {offsets = [0, 0], sizes = [32, 32], strides = [1, 1]} : vector<32x96xf32> to vector<32x32xf32>
    %13 = vector.broadcast %6 : vector<1x32xf32> to vector<32x32xf32>
    %14 = arith.addf %12, %13 : vector<32x32xf32>
    %15 = vector.extract_strided_slice %11 {offsets = [0, 32], sizes = [32, 32], strides = [1, 1]} : vector<32x96xf32> to vector<32x32xf32>
    %16 = vector.broadcast %7 : vector<1x32xf32> to vector<32x32xf32>
    %17 = arith.addf %15, %16 : vector<32x32xf32>
    %18 = vector.extract_strided_slice %11 {offsets = [0, 64], sizes = [32, 32], strides = [1, 1]} : vector<32x96xf32> to vector<32x32xf32>
    %19 = vector.broadcast %8 : vector<1x32xf32> to vector<32x32xf32>
    %20 = arith.addf %18, %19 : vector<32x32xf32>
    %c0_6 = arith.constant 0 : index
    %c0_7 = arith.constant 0 : index
    %c0_8 = arith.constant 0 : index
    %21 = vector.load %arg11[%c0_6, %c0_7, %c0_8] : memref<2x4x32xf32, #tpu.memory_space<vmem>>, vector<1x4x32xf32>
    %22 = vector.shape_cast %21 : vector<1x4x32xf32> to vector<4x32xf32>
    %23 = vector.extract_strided_slice %14 {offsets = [0, 0], sizes = [4, 32], strides = [1, 1]} : vector<32x32xf32> to vector<4x32xf32>
    %24 = vector.broadcast %9 : vector<1x32xf32> to vector<4x32xf32>
    %25 = arith.mulf %24, %22 : vector<4x32xf32>
    %26 = arith.addf %23, %25 : vector<4x32xf32>
    %27 = arith.negf %26 : vector<4x32xf32>
    %28 = math.exp %27 : vector<4x32xf32>
    %cst_9 = arith.constant 1.000000e+00 : f32
    %29 = vector.broadcast %cst_9 : f32 to vector<4x32xf32>
    %30 = arith.addf %29, %28 : vector<4x32xf32>
    %31 = arith.divf %29, %30 : vector<4x32xf32>
    %32 = vector.extract_strided_slice %17 {offsets = [0, 0], sizes = [4, 32], strides = [1, 1]} : vector<32x32xf32> to vector<4x32xf32>
    %33 = vector.broadcast %10 : vector<1x32xf32> to vector<4x32xf32>
    %34 = arith.mulf %33, %22 : vector<4x32xf32>
    %35 = arith.addf %32, %34 : vector<4x32xf32>
    %36 = math.tanh %35 : vector<4x32xf32>
    %cst_10 = arith.constant 1.000000e+00 : f32
    %37 = vector.broadcast %cst_10 : f32 to vector<4x32xf32>
    %38 = arith.addf %36, %37 : vector<4x32xf32>
    %39 = arith.mulf %31, %22 : vector<4x32xf32>
    %cst_11 = arith.constant 1.000000e+00 : f32
    %40 = vector.broadcast %cst_11 : f32 to vector<4x32xf32>
    %41 = arith.subf %40, %31 : vector<4x32xf32>
    %42 = vector.extract_strided_slice %20 {offsets = [0, 0], sizes = [4, 32], strides = [1, 1]} : vector<32x32xf32> to vector<4x32xf32>
    %43 = arith.mulf %38, %22 : vector<4x32xf32>
    %44 = arith.addf %42, %43 : vector<4x32xf32>
    %45 = math.tanh %44 : vector<4x32xf32>
    %46 = arith.mulf %41, %45 : vector<4x32xf32>
    %47 = arith.addf %39, %46 : vector<4x32xf32>
    %48 = vector.extract_strided_slice %14 {offsets = [4, 0], sizes = [4, 32], strides = [1, 1]} : vector<32x32xf32> to vector<4x32xf32>
    %49 = vector.broadcast %9 : vector<1x32xf32> to vector<4x32xf32>
    %50 = arith.mulf %49, %47 : vector<4x32xf32>
    %51 = arith.addf %48, %50 : vector<4x32xf32>
    %52 = arith.negf %51 : vector<4x32xf32>
    %53 = math.exp %52 : vector<4x32xf32>
    %cst_12 = arith.constant 1.000000e+00 : f32
    %54 = vector.broadcast %cst_12 : f32 to vector<4x32xf32>
    %55 = arith.addf %54, %53 : vector<4x32xf32>
    %56 = arith.divf %54, %55 : vector<4x32xf32>
    %57 = vector.extract_strided_slice %17 {offsets = [4, 0], sizes = [4, 32], strides = [1, 1]} : vector<32x32xf32> to vector<4x32xf32>
    %58 = vector.broadcast %10 : vector<1x32xf32> to vector<4x32xf32>
    %59 = arith.mulf %58, %47 : vector<4x32xf32>
    %60 = arith.addf %57, %59 : vector<4x32xf32>
    %61 = math.tanh %60 : vector<4x32xf32>
    %cst_13 = arith.constant 1.000000e+00 : f32
    %62 = vector.broadcast %cst_13 : f32 to vector<4x32xf32>
    %63 = arith.addf %61, %62 : vector<4x32xf32>
    %64 = arith.mulf %56, %47 : vector<4x32xf32>
    %cst_14 = arith.constant 1.000000e+00 : f32
    %65 = vector.broadcast %cst_14 : f32 to vector<4x32xf32>
    %66 = arith.subf %65, %56 : vector<4x32xf32>
    %67 = vector.extract_strided_slice %20 {offsets = [4, 0], sizes = [4, 32], strides = [1, 1]} : vector<32x32xf32> to vector<4x32xf32>
    %68 = arith.mulf %63, %47 : vector<4x32xf32>
    %69 = arith.addf %67, %68 : vector<4x32xf32>
    %70 = math.tanh %69 : vector<4x32xf32>
    %71 = arith.mulf %66, %70 : vector<4x32xf32>
    %72 = arith.addf %64, %71 : vector<4x32xf32>
    %73 = vector.extract_strided_slice %14 {offsets = [8, 0], sizes = [4, 32], strides = [1, 1]} : vector<32x32xf32> to vector<4x32xf32>
    %74 = vector.broadcast %9 : vector<1x32xf32> to vector<4x32xf32>
    %75 = arith.mulf %74, %72 : vector<4x32xf32>
    %76 = arith.addf %73, %75 : vector<4x32xf32>
    %77 = arith.negf %76 : vector<4x32xf32>
    %78 = math.exp %77 : vector<4x32xf32>
    %cst_15 = arith.constant 1.000000e+00 : f32
    %79 = vector.broadcast %cst_15 : f32 to vector<4x32xf32>
    %80 = arith.addf %79, %78 : vector<4x32xf32>
    %81 = arith.divf %79, %80 : vector<4x32xf32>
    %82 = vector.extract_strided_slice %17 {offsets = [8, 0], sizes = [4, 32], strides = [1, 1]} : vector<32x32xf32> to vector<4x32xf32>
    %83 = vector.broadcast %10 : vector<1x32xf32> to vector<4x32xf32>
    %84 = arith.mulf %83, %72 : vector<4x32xf32>
    %85 = arith.addf %82, %84 : vector<4x32xf32>
    %86 = math.tanh %85 : vector<4x32xf32>
    %cst_16 = arith.constant 1.000000e+00 : f32
    %87 = vector.broadcast %cst_16 : f32 to vector<4x32xf32>
    %88 = arith.addf %86, %87 : vector<4x32xf32>
    %89 = arith.mulf %81, %72 : vector<4x32xf32>
    %cst_17 = arith.constant 1.000000e+00 : f32
    %90 = vector.broadcast %cst_17 : f32 to vector<4x32xf32>
    %91 = arith.subf %90, %81 : vector<4x32xf32>
    %92 = vector.extract_strided_slice %20 {offsets = [8, 0], sizes = [4, 32], strides = [1, 1]} : vector<32x32xf32> to vector<4x32xf32>
    %93 = arith.mulf %88, %72 : vector<4x32xf32>
    %94 = arith.addf %92, %93 : vector<4x32xf32>
    %95 = math.tanh %94 : vector<4x32xf32>
    %96 = arith.mulf %91, %95 : vector<4x32xf32>
    %97 = arith.addf %89, %96 : vector<4x32xf32>
    %98 = vector.extract_strided_slice %14 {offsets = [12, 0], sizes = [4, 32], strides = [1, 1]} : vector<32x32xf32> to vector<4x32xf32>
    %99 = vector.broadcast %9 : vector<1x32xf32> to vector<4x32xf32>
    %100 = arith.mulf %99, %97 : vector<4x32xf32>
    %101 = arith.addf %98, %100 : vector<4x32xf32>
    %102 = arith.negf %101 : vector<4x32xf32>
    %103 = math.exp %102 : vector<4x32xf32>
    %cst_18 = arith.constant 1.000000e+00 : f32
    %104 = vector.broadcast %cst_18 : f32 to vector<4x32xf32>
    %105 = arith.addf %104, %103 : vector<4x32xf32>
    %106 = arith.divf %104, %105 : vector<4x32xf32>
    %107 = vector.extract_strided_slice %17 {offsets = [12, 0], sizes = [4, 32], strides = [1, 1]} : vector<32x32xf32> to vector<4x32xf32>
    %108 = vector.broadcast %10 : vector<1x32xf32> to vector<4x32xf32>
    %109 = arith.mulf %108, %97 : vector<4x32xf32>
    %110 = arith.addf %107, %109 : vector<4x32xf32>
    %111 = math.tanh %110 : vector<4x32xf32>
    %cst_19 = arith.constant 1.000000e+00 : f32
    %112 = vector.broadcast %cst_19 : f32 to vector<4x32xf32>
    %113 = arith.addf %111, %112 : vector<4x32xf32>
    %114 = arith.mulf %106, %97 : vector<4x32xf32>
    %cst_20 = arith.constant 1.000000e+00 : f32
    %115 = vector.broadcast %cst_20 : f32 to vector<4x32xf32>
    %116 = arith.subf %115, %106 : vector<4x32xf32>
    %117 = vector.extract_strided_slice %20 {offsets = [12, 0], sizes = [4, 32], strides = [1, 1]} : vector<32x32xf32> to vector<4x32xf32>
    %118 = arith.mulf %113, %97 : vector<4x32xf32>
    %119 = arith.addf %117, %118 : vector<4x32xf32>
    %120 = math.tanh %119 : vector<4x32xf32>
    %121 = arith.mulf %116, %120 : vector<4x32xf32>
    %122 = arith.addf %114, %121 : vector<4x32xf32>
    %123 = vector.extract_strided_slice %14 {offsets = [16, 0], sizes = [4, 32], strides = [1, 1]} : vector<32x32xf32> to vector<4x32xf32>
    %124 = vector.broadcast %9 : vector<1x32xf32> to vector<4x32xf32>
    %125 = arith.mulf %124, %122 : vector<4x32xf32>
    %126 = arith.addf %123, %125 : vector<4x32xf32>
    %127 = arith.negf %126 : vector<4x32xf32>
    %128 = math.exp %127 : vector<4x32xf32>
    %cst_21 = arith.constant 1.000000e+00 : f32
    %129 = vector.broadcast %cst_21 : f32 to vector<4x32xf32>
    %130 = arith.addf %129, %128 : vector<4x32xf32>
    %131 = arith.divf %129, %130 : vector<4x32xf32>
    %132 = vector.extract_strided_slice %17 {offsets = [16, 0], sizes = [4, 32], strides = [1, 1]} : vector<32x32xf32> to vector<4x32xf32>
    %133 = vector.broadcast %10 : vector<1x32xf32> to vector<4x32xf32>
    %134 = arith.mulf %133, %122 : vector<4x32xf32>
    %135 = arith.addf %132, %134 : vector<4x32xf32>
    %136 = math.tanh %135 : vector<4x32xf32>
    %cst_22 = arith.constant 1.000000e+00 : f32
    %137 = vector.broadcast %cst_22 : f32 to vector<4x32xf32>
    %138 = arith.addf %136, %137 : vector<4x32xf32>
    %139 = arith.mulf %131, %122 : vector<4x32xf32>
    %cst_23 = arith.constant 1.000000e+00 : f32
    %140 = vector.broadcast %cst_23 : f32 to vector<4x32xf32>
    %141 = arith.subf %140, %131 : vector<4x32xf32>
    %142 = vector.extract_strided_slice %20 {offsets = [16, 0], sizes = [4, 32], strides = [1, 1]} : vector<32x32xf32> to vector<4x32xf32>
    %143 = arith.mulf %138, %122 : vector<4x32xf32>
    %144 = arith.addf %142, %143 : vector<4x32xf32>
    %145 = math.tanh %144 : vector<4x32xf32>
    %146 = arith.mulf %141, %145 : vector<4x32xf32>
    %147 = arith.addf %139, %146 : vector<4x32xf32>
    %148 = vector.extract_strided_slice %14 {offsets = [20, 0], sizes = [4, 32], strides = [1, 1]} : vector<32x32xf32> to vector<4x32xf32>
    %149 = vector.broadcast %9 : vector<1x32xf32> to vector<4x32xf32>
    %150 = arith.mulf %149, %147 : vector<4x32xf32>
    %151 = arith.addf %148, %150 : vector<4x32xf32>
    %152 = arith.negf %151 : vector<4x32xf32>
    %153 = math.exp %152 : vector<4x32xf32>
    %cst_24 = arith.constant 1.000000e+00 : f32
    %154 = vector.broadcast %cst_24 : f32 to vector<4x32xf32>
    %155 = arith.addf %154, %153 : vector<4x32xf32>
    %156 = arith.divf %154, %155 : vector<4x32xf32>
    %157 = vector.extract_strided_slice %17 {offsets = [20, 0], sizes = [4, 32], strides = [1, 1]} : vector<32x32xf32> to vector<4x32xf32>
    %158 = vector.broadcast %10 : vector<1x32xf32> to vector<4x32xf32>
    %159 = arith.mulf %158, %147 : vector<4x32xf32>
    %160 = arith.addf %157, %159 : vector<4x32xf32>
    %161 = math.tanh %160 : vector<4x32xf32>
    %cst_25 = arith.constant 1.000000e+00 : f32
    %162 = vector.broadcast %cst_25 : f32 to vector<4x32xf32>
    %163 = arith.addf %161, %162 : vector<4x32xf32>
    %164 = arith.mulf %156, %147 : vector<4x32xf32>
    %cst_26 = arith.constant 1.000000e+00 : f32
    %165 = vector.broadcast %cst_26 : f32 to vector<4x32xf32>
    %166 = arith.subf %165, %156 : vector<4x32xf32>
    %167 = vector.extract_strided_slice %20 {offsets = [20, 0], sizes = [4, 32], strides = [1, 1]} : vector<32x32xf32> to vector<4x32xf32>
    %168 = arith.mulf %163, %147 : vector<4x32xf32>
    %169 = arith.addf %167, %168 : vector<4x32xf32>
    %170 = math.tanh %169 : vector<4x32xf32>
    %171 = arith.mulf %166, %170 : vector<4x32xf32>
    %172 = arith.addf %164, %171 : vector<4x32xf32>
    %173 = vector.extract_strided_slice %14 {offsets = [24, 0], sizes = [4, 32], strides = [1, 1]} : vector<32x32xf32> to vector<4x32xf32>
    %174 = vector.broadcast %9 : vector<1x32xf32> to vector<4x32xf32>
    %175 = arith.mulf %174, %172 : vector<4x32xf32>
    %176 = arith.addf %173, %175 : vector<4x32xf32>
    %177 = arith.negf %176 : vector<4x32xf32>
    %178 = math.exp %177 : vector<4x32xf32>
    %cst_27 = arith.constant 1.000000e+00 : f32
    %179 = vector.broadcast %cst_27 : f32 to vector<4x32xf32>
    %180 = arith.addf %179, %178 : vector<4x32xf32>
    %181 = arith.divf %179, %180 : vector<4x32xf32>
    %182 = vector.extract_strided_slice %17 {offsets = [24, 0], sizes = [4, 32], strides = [1, 1]} : vector<32x32xf32> to vector<4x32xf32>
    %183 = vector.broadcast %10 : vector<1x32xf32> to vector<4x32xf32>
    %184 = arith.mulf %183, %172 : vector<4x32xf32>
    %185 = arith.addf %182, %184 : vector<4x32xf32>
    %186 = math.tanh %185 : vector<4x32xf32>
    %cst_28 = arith.constant 1.000000e+00 : f32
    %187 = vector.broadcast %cst_28 : f32 to vector<4x32xf32>
    %188 = arith.addf %186, %187 : vector<4x32xf32>
    %189 = arith.mulf %181, %172 : vector<4x32xf32>
    %cst_29 = arith.constant 1.000000e+00 : f32
    %190 = vector.broadcast %cst_29 : f32 to vector<4x32xf32>
    %191 = arith.subf %190, %181 : vector<4x32xf32>
    %192 = vector.extract_strided_slice %20 {offsets = [24, 0], sizes = [4, 32], strides = [1, 1]} : vector<32x32xf32> to vector<4x32xf32>
    %193 = arith.mulf %188, %172 : vector<4x32xf32>
    %194 = arith.addf %192, %193 : vector<4x32xf32>
    %195 = math.tanh %194 : vector<4x32xf32>
    %196 = arith.mulf %191, %195 : vector<4x32xf32>
    %197 = arith.addf %189, %196 : vector<4x32xf32>
    %198 = vector.extract_strided_slice %14 {offsets = [28, 0], sizes = [4, 32], strides = [1, 1]} : vector<32x32xf32> to vector<4x32xf32>
    %199 = vector.broadcast %9 : vector<1x32xf32> to vector<4x32xf32>
    %200 = arith.mulf %199, %197 : vector<4x32xf32>
    %201 = arith.addf %198, %200 : vector<4x32xf32>
    %202 = arith.negf %201 : vector<4x32xf32>
    %203 = math.exp %202 : vector<4x32xf32>
    %cst_30 = arith.constant 1.000000e+00 : f32
    %204 = vector.broadcast %cst_30 : f32 to vector<4x32xf32>
    %205 = arith.addf %204, %203 : vector<4x32xf32>
    %206 = arith.divf %204, %205 : vector<4x32xf32>
    %207 = vector.extract_strided_slice %17 {offsets = [28, 0], sizes = [4, 32], strides = [1, 1]} : vector<32x32xf32> to vector<4x32xf32>
    %208 = vector.broadcast %10 : vector<1x32xf32> to vector<4x32xf32>
    %209 = arith.mulf %208, %197 : vector<4x32xf32>
    %210 = arith.addf %207, %209 : vector<4x32xf32>
    %211 = math.tanh %210 : vector<4x32xf32>
    %cst_31 = arith.constant 1.000000e+00 : f32
    %212 = vector.broadcast %cst_31 : f32 to vector<4x32xf32>
    %213 = arith.addf %211, %212 : vector<4x32xf32>
    %214 = arith.mulf %206, %197 : vector<4x32xf32>
    %cst_32 = arith.constant 1.000000e+00 : f32
    %215 = vector.broadcast %cst_32 : f32 to vector<4x32xf32>
    %216 = arith.subf %215, %206 : vector<4x32xf32>
    %217 = vector.extract_strided_slice %20 {offsets = [28, 0], sizes = [4, 32], strides = [1, 1]} : vector<32x32xf32> to vector<4x32xf32>
    %218 = arith.mulf %213, %197 : vector<4x32xf32>
    %219 = arith.addf %217, %218 : vector<4x32xf32>
    %220 = math.tanh %219 : vector<4x32xf32>
    %221 = arith.mulf %216, %220 : vector<4x32xf32>
    %222 = arith.addf %214, %221 : vector<4x32xf32>
    %c0_33 = arith.constant 0 : index
    %c0_34 = arith.constant 0 : index
    %c0_35 = arith.constant 0 : index
    %223 = vector.load %arg11[%c0_33, %c0_34, %c0_35] : memref<2x4x32xf32, #tpu.memory_space<vmem>>, vector<1x4x32xf32>
    %224 = vector.shape_cast %223 : vector<1x4x32xf32> to vector<4x32xf32>
    %225 = vector.shape_cast %222 : vector<4x32xf32> to vector<1x4x32xf32>
    tpu.vector_store %arg11[%c0_33, %c0_34, %c0_35], %225 {strides = array<i32>} : memref<2x4x32xf32, #tpu.memory_space<vmem>>, vector<1x4x32xf32>,
    %226 = tpu.concatenate %47, %72, %97, %122, %147, %172, %197, %222 in 0 : vector<4x32xf32>, vector<4x32xf32>, vector<4x32xf32>, vector<4x32xf32>, vector<4x32xf32>, vector<4x32xf32>, vector<4x32xf32>, vector<4x32xf32> -> vector<32x32xf32>
    %c0_36 = arith.constant 0 : index
    %c0_37 = arith.constant 0 : index
    %227 = vector.load %arg4[%c0_36, %c0_37] : memref<32x96xf32, #tpu.memory_space<vmem>>, vector<32x96xf32>
    %c0_38 = arith.constant 0 : index
    %c0_39 = arith.constant 0 : index
    %228 = vector.load %arg6[%c0_38, %c0_39] : memref<5x32xf32, #tpu.memory_space<vmem>>, vector<5x32xf32>
    %229 = vector.extract_strided_slice %228 {offsets = [0, 0], sizes = [1, 32], strides = [1, 1]} : vector<5x32xf32> to vector<1x32xf32>
    %230 = vector.extract_strided_slice %228 {offsets = [1, 0], sizes = [1, 32], strides = [1, 1]} : vector<5x32xf32> to vector<1x32xf32>
    %231 = vector.extract_strided_slice %228 {offsets = [2, 0], sizes = [1, 32], strides = [1, 1]} : vector<5x32xf32> to vector<1x32xf32>
    %232 = vector.extract_strided_slice %228 {offsets = [3, 0], sizes = [1, 32], strides = [1, 1]} : vector<5x32xf32> to vector<1x32xf32>
    %233 = vector.extract_strided_slice %228 {offsets = [4, 0], sizes = [1, 32], strides = [1, 1]} : vector<5x32xf32> to vector<1x32xf32>
    %cst_40 = arith.constant dense<0.000000e+00> : vector<32x96xf32>
    %234 = tpu.matmul %226, %227, %cst_40 {dimension_numbers = #tpu.dot_dimension_numbers<[1], [0], [0], [1], [0, 0, 1, 1], [], []>} : vector<32x32xf32>, vector<32x96xf32>, vector<32x96xf32> -> vector<32x96xf32>
    %235 = vector.extract_strided_slice %234 {offsets = [0, 0], sizes = [32, 32], strides = [1, 1]} : vector<32x96xf32> to vector<32x32xf32>
    %236 = vector.broadcast %229 : vector<1x32xf32> to vector<32x32xf32>
    %237 = arith.addf %235, %236 : vector<32x32xf32>
    %238 = vector.extract_strided_slice %234 {offsets = [0, 32], sizes = [32, 32], strides = [1, 1]} : vector<32x96xf32> to vector<32x32xf32>
    %239 = vector.broadcast %230 : vector<1x32xf32> to vector<32x32xf32>
    %240 = arith.addf %238, %239 : vector<32x32xf32>
    %241 = vector.extract_strided_slice %234 {offsets = [0, 64], sizes = [32, 32], strides = [1, 1]} : vector<32x96xf32> to vector<32x32xf32>
    %242 = vector.broadcast %231 : vector<1x32xf32> to vector<32x32xf32>
    %243 = arith.addf %241, %242 : vector<32x32xf32>
    %c1 = arith.constant 1 : index
    %c0_41 = arith.constant 0 : index
    %c0_42 = arith.constant 0 : index
    %244 = vector.load %arg11[%c1, %c0_41, %c0_42] : memref<2x4x32xf32, #tpu.memory_space<vmem>>, vector<1x4x32xf32>
    %245 = vector.shape_cast %244 : vector<1x4x32xf32> to vector<4x32xf32>
    %246 = vector.extract_strided_slice %237 {offsets = [0, 0], sizes = [4, 32], strides = [1, 1]} : vector<32x32xf32> to vector<4x32xf32>
    %247 = vector.broadcast %232 : vector<1x32xf32> to vector<4x32xf32>
    %248 = arith.mulf %247, %245 : vector<4x32xf32>
    %249 = arith.addf %246, %248 : vector<4x32xf32>
    %250 = arith.negf %249 : vector<4x32xf32>
    %251 = math.exp %250 : vector<4x32xf32>
    %cst_43 = arith.constant 1.000000e+00 : f32
    %252 = vector.broadcast %cst_43 : f32 to vector<4x32xf32>
    %253 = arith.addf %252, %251 : vector<4x32xf32>
    %254 = arith.divf %252, %253 : vector<4x32xf32>
    %255 = vector.extract_strided_slice %240 {offsets = [0, 0], sizes = [4, 32], strides = [1, 1]} : vector<32x32xf32> to vector<4x32xf32>
    %256 = vector.broadcast %233 : vector<1x32xf32> to vector<4x32xf32>
    %257 = arith.mulf %256, %245 : vector<4x32xf32>
    %258 = arith.addf %255, %257 : vector<4x32xf32>
    %259 = math.tanh %258 : vector<4x32xf32>
    %cst_44 = arith.constant 1.000000e+00 : f32
    %260 = vector.broadcast %cst_44 : f32 to vector<4x32xf32>
    %261 = arith.addf %259, %260 : vector<4x32xf32>
    %262 = arith.mulf %254, %245 : vector<4x32xf32>
    %cst_45 = arith.constant 1.000000e+00 : f32
    %263 = vector.broadcast %cst_45 : f32 to vector<4x32xf32>
    %264 = arith.subf %263, %254 : vector<4x32xf32>
    %265 = vector.extract_strided_slice %243 {offsets = [0, 0], sizes = [4, 32], strides = [1, 1]} : vector<32x32xf32> to vector<4x32xf32>
    %266 = arith.mulf %261, %245 : vector<4x32xf32>
    %267 = arith.addf %265, %266 : vector<4x32xf32>
    %268 = math.tanh %267 : vector<4x32xf32>
    %269 = arith.mulf %264, %268 : vector<4x32xf32>
    %270 = arith.addf %262, %269 : vector<4x32xf32>
    %271 = vector.extract_strided_slice %237 {offsets = [4, 0], sizes = [4, 32], strides = [1, 1]} : vector<32x32xf32> to vector<4x32xf32>
    %272 = vector.broadcast %232 : vector<1x32xf32> to vector<4x32xf32>
    %273 = arith.mulf %272, %270 : vector<4x32xf32>
    %274 = arith.addf %271, %273 : vector<4x32xf32>
    %275 = arith.negf %274 : vector<4x32xf32>
    %276 = math.exp %275 : vector<4x32xf32>
    %cst_46 = arith.constant 1.000000e+00 : f32
    %277 = vector.broadcast %cst_46 : f32 to vector<4x32xf32>
    %278 = arith.addf %277, %276 : vector<4x32xf32>
    %279 = arith.divf %277, %278 : vector<4x32xf32>
    %280 = vector.extract_strided_slice %240 {offsets = [4, 0], sizes = [4, 32], strides = [1, 1]} : vector<32x32xf32> to vector<4x32xf32>
    %281 = vector.broadcast %233 : vector<1x32xf32> to vector<4x32xf32>
    %282 = arith.mulf %281, %270 : vector<4x32xf32>
    %283 = arith.addf %280, %282 : vector<4x32xf32>
    %284 = math.tanh %283 : vector<4x32xf32>
    %cst_47 = arith.constant 1.000000e+00 : f32
    %285 = vector.broadcast %cst_47 : f32 to vector<4x32xf32>
    %286 = arith.addf %284, %285 : vector<4x32xf32>
    %287 = arith.mulf %279, %270 : vector<4x32xf32>
    %cst_48 = arith.constant 1.000000e+00 : f32
    %288 = vector.broadcast %cst_48 : f32 to vector<4x32xf32>
    %289 = arith.subf %288, %279 : vector<4x32xf32>
    %290 = vector.extract_strided_slice %243 {offsets = [4, 0], sizes = [4, 32], strides = [1, 1]} : vector<32x32xf32> to vector<4x32xf32>
    %291 = arith.mulf %286, %270 : vector<4x32xf32>
    %292 = arith.addf %290, %291 : vector<4x32xf32>
    %293 = math.tanh %292 : vector<4x32xf32>
    %294 = arith.mulf %289, %293 : vector<4x32xf32>
    %295 = arith.addf %287, %294 : vector<4x32xf32>
    %296 = vector.extract_strided_slice %237 {offsets = [8, 0], sizes = [4, 32], strides = [1, 1]} : vector<32x32xf32> to vector<4x32xf32>
    %297 = vector.broadcast %232 : vector<1x32xf32> to vector<4x32xf32>
    %298 = arith.mulf %297, %295 : vector<4x32xf32>
    %299 = arith.addf %296, %298 : vector<4x32xf32>
    %300 = arith.negf %299 : vector<4x32xf32>
    %301 = math.exp %300 : vector<4x32xf32>
    %cst_49 = arith.constant 1.000000e+00 : f32
    %302 = vector.broadcast %cst_49 : f32 to vector<4x32xf32>
    %303 = arith.addf %302, %301 : vector<4x32xf32>
    %304 = arith.divf %302, %303 : vector<4x32xf32>
    %305 = vector.extract_strided_slice %240 {offsets = [8, 0], sizes = [4, 32], strides = [1, 1]} : vector<32x32xf32> to vector<4x32xf32>
    %306 = vector.broadcast %233 : vector<1x32xf32> to vector<4x32xf32>
    %307 = arith.mulf %306, %295 : vector<4x32xf32>
    %308 = arith.addf %305, %307 : vector<4x32xf32>
    %309 = math.tanh %308 : vector<4x32xf32>
    %cst_50 = arith.constant 1.000000e+00 : f32
    %310 = vector.broadcast %cst_50 : f32 to vector<4x32xf32>
    %311 = arith.addf %309, %310 : vector<4x32xf32>
    %312 = arith.mulf %304, %295 : vector<4x32xf32>
    %cst_51 = arith.constant 1.000000e+00 : f32
    %313 = vector.broadcast %cst_51 : f32 to vector<4x32xf32>
    %314 = arith.subf %313, %304 : vector<4x32xf32>
    %315 = vector.extract_strided_slice %243 {offsets = [8, 0], sizes = [4, 32], strides = [1, 1]} : vector<32x32xf32> to vector<4x32xf32>
    %316 = arith.mulf %311, %295 : vector<4x32xf32>
    %317 = arith.addf %315, %316 : vector<4x32xf32>
    %318 = math.tanh %317 : vector<4x32xf32>
    %319 = arith.mulf %314, %318 : vector<4x32xf32>
    %320 = arith.addf %312, %319 : vector<4x32xf32>
    %321 = vector.extract_strided_slice %237 {offsets = [12, 0], sizes = [4, 32], strides = [1, 1]} : vector<32x32xf32> to vector<4x32xf32>
    %322 = vector.broadcast %232 : vector<1x32xf32> to vector<4x32xf32>
    %323 = arith.mulf %322, %320 : vector<4x32xf32>
    %324 = arith.addf %321, %323 : vector<4x32xf32>
    %325 = arith.negf %324 : vector<4x32xf32>
    %326 = math.exp %325 : vector<4x32xf32>
    %cst_52 = arith.constant 1.000000e+00 : f32
    %327 = vector.broadcast %cst_52 : f32 to vector<4x32xf32>
    %328 = arith.addf %327, %326 : vector<4x32xf32>
    %329 = arith.divf %327, %328 : vector<4x32xf32>
    %330 = vector.extract_strided_slice %240 {offsets = [12, 0], sizes = [4, 32], strides = [1, 1]} : vector<32x32xf32> to vector<4x32xf32>
    %331 = vector.broadcast %233 : vector<1x32xf32> to vector<4x32xf32>
    %332 = arith.mulf %331, %320 : vector<4x32xf32>
    %333 = arith.addf %330, %332 : vector<4x32xf32>
    %334 = math.tanh %333 : vector<4x32xf32>
    %cst_53 = arith.constant 1.000000e+00 : f32
    %335 = vector.broadcast %cst_53 : f32 to vector<4x32xf32>
    %336 = arith.addf %334, %335 : vector<4x32xf32>
    %337 = arith.mulf %329, %320 : vector<4x32xf32>
    %cst_54 = arith.constant 1.000000e+00 : f32
    %338 = vector.broadcast %cst_54 : f32 to vector<4x32xf32>
    %339 = arith.subf %338, %329 : vector<4x32xf32>
    %340 = vector.extract_strided_slice %243 {offsets = [12, 0], sizes = [4, 32], strides = [1, 1]} : vector<32x32xf32> to vector<4x32xf32>
    %341 = arith.mulf %336, %320 : vector<4x32xf32>
    %342 = arith.addf %340, %341 : vector<4x32xf32>
    %343 = math.tanh %342 : vector<4x32xf32>
    %344 = arith.mulf %339, %343 : vector<4x32xf32>
    %345 = arith.addf %337, %344 : vector<4x32xf32>
    %346 = vector.extract_strided_slice %237 {offsets = [16, 0], sizes = [4, 32], strides = [1, 1]} : vector<32x32xf32> to vector<4x32xf32>
    %347 = vector.broadcast %232 : vector<1x32xf32> to vector<4x32xf32>
    %348 = arith.mulf %347, %345 : vector<4x32xf32>
    %349 = arith.addf %346, %348 : vector<4x32xf32>
    %350 = arith.negf %349 : vector<4x32xf32>
    %351 = math.exp %350 : vector<4x32xf32>
    %cst_55 = arith.constant 1.000000e+00 : f32
    %352 = vector.broadcast %cst_55 : f32 to vector<4x32xf32>
    %353 = arith.addf %352, %351 : vector<4x32xf32>
    %354 = arith.divf %352, %353 : vector<4x32xf32>
    %355 = vector.extract_strided_slice %240 {offsets = [16, 0], sizes = [4, 32], strides = [1, 1]} : vector<32x32xf32> to vector<4x32xf32>
    %356 = vector.broadcast %233 : vector<1x32xf32> to vector<4x32xf32>
    %357 = arith.mulf %356, %345 : vector<4x32xf32>
    %358 = arith.addf %355, %357 : vector<4x32xf32>
    %359 = math.tanh %358 : vector<4x32xf32>
    %cst_56 = arith.constant 1.000000e+00 : f32
    %360 = vector.broadcast %cst_56 : f32 to vector<4x32xf32>
    %361 = arith.addf %359, %360 : vector<4x32xf32>
    %362 = arith.mulf %354, %345 : vector<4x32xf32>
    %cst_57 = arith.constant 1.000000e+00 : f32
    %363 = vector.broadcast %cst_57 : f32 to vector<4x32xf32>
    %364 = arith.subf %363, %354 : vector<4x32xf32>
    %365 = vector.extract_strided_slice %243 {offsets = [16, 0], sizes = [4, 32], strides = [1, 1]} : vector<32x32xf32> to vector<4x32xf32>
    %366 = arith.mulf %361, %345 : vector<4x32xf32>
    %367 = arith.addf %365, %366 : vector<4x32xf32>
    %368 = math.tanh %367 : vector<4x32xf32>
    %369 = arith.mulf %364, %368 : vector<4x32xf32>
    %370 = arith.addf %362, %369 : vector<4x32xf32>
    %371 = vector.extract_strided_slice %237 {offsets = [20, 0], sizes = [4, 32], strides = [1, 1]} : vector<32x32xf32> to vector<4x32xf32>
    %372 = vector.broadcast %232 : vector<1x32xf32> to vector<4x32xf32>
    %373 = arith.mulf %372, %370 : vector<4x32xf32>
    %374 = arith.addf %371, %373 : vector<4x32xf32>
    %375 = arith.negf %374 : vector<4x32xf32>
    %376 = math.exp %375 : vector<4x32xf32>
    %cst_58 = arith.constant 1.000000e+00 : f32
    %377 = vector.broadcast %cst_58 : f32 to vector<4x32xf32>
    %378 = arith.addf %377, %376 : vector<4x32xf32>
    %379 = arith.divf %377, %378 : vector<4x32xf32>
    %380 = vector.extract_strided_slice %240 {offsets = [20, 0], sizes = [4, 32], strides = [1, 1]} : vector<32x32xf32> to vector<4x32xf32>
    %381 = vector.broadcast %233 : vector<1x32xf32> to vector<4x32xf32>
    %382 = arith.mulf %381, %370 : vector<4x32xf32>
    %383 = arith.addf %380, %382 : vector<4x32xf32>
    %384 = math.tanh %383 : vector<4x32xf32>
    %cst_59 = arith.constant 1.000000e+00 : f32
    %385 = vector.broadcast %cst_59 : f32 to vector<4x32xf32>
    %386 = arith.addf %384, %385 : vector<4x32xf32>
    %387 = arith.mulf %379, %370 : vector<4x32xf32>
    %cst_60 = arith.constant 1.000000e+00 : f32
    %388 = vector.broadcast %cst_60 : f32 to vector<4x32xf32>
    %389 = arith.subf %388, %379 : vector<4x32xf32>
    %390 = vector.extract_strided_slice %243 {offsets = [20, 0], sizes = [4, 32], strides = [1, 1]} : vector<32x32xf32> to vector<4x32xf32>
    %391 = arith.mulf %386, %370 : vector<4x32xf32>
    %392 = arith.addf %390, %391 : vector<4x32xf32>
    %393 = math.tanh %392 : vector<4x32xf32>
    %394 = arith.mulf %389, %393 : vector<4x32xf32>
    %395 = arith.addf %387, %394 : vector<4x32xf32>
    %396 = vector.extract_strided_slice %237 {offsets = [24, 0], sizes = [4, 32], strides = [1, 1]} : vector<32x32xf32> to vector<4x32xf32>
    %397 = vector.broadcast %232 : vector<1x32xf32> to vector<4x32xf32>
    %398 = arith.mulf %397, %395 : vector<4x32xf32>
    %399 = arith.addf %396, %398 : vector<4x32xf32>
    %400 = arith.negf %399 : vector<4x32xf32>
    %401 = math.exp %400 : vector<4x32xf32>
    %cst_61 = arith.constant 1.000000e+00 : f32
    %402 = vector.broadcast %cst_61 : f32 to vector<4x32xf32>
    %403 = arith.addf %402, %401 : vector<4x32xf32>
    %404 = arith.divf %402, %403 : vector<4x32xf32>
    %405 = vector.extract_strided_slice %240 {offsets = [24, 0], sizes = [4, 32], strides = [1, 1]} : vector<32x32xf32> to vector<4x32xf32>
    %406 = vector.broadcast %233 : vector<1x32xf32> to vector<4x32xf32>
    %407 = arith.mulf %406, %395 : vector<4x32xf32>
    %408 = arith.addf %405, %407 : vector<4x32xf32>
    %409 = math.tanh %408 : vector<4x32xf32>
    %cst_62 = arith.constant 1.000000e+00 : f32
    %410 = vector.broadcast %cst_62 : f32 to vector<4x32xf32>
    %411 = arith.addf %409, %410 : vector<4x32xf32>
    %412 = arith.mulf %404, %395 : vector<4x32xf32>
    %cst_63 = arith.constant 1.000000e+00 : f32
    %413 = vector.broadcast %cst_63 : f32 to vector<4x32xf32>
    %414 = arith.subf %413, %404 : vector<4x32xf32>
    %415 = vector.extract_strided_slice %243 {offsets = [24, 0], sizes = [4, 32], strides = [1, 1]} : vector<32x32xf32> to vector<4x32xf32>
    %416 = arith.mulf %411, %395 : vector<4x32xf32>
    %417 = arith.addf %415, %416 : vector<4x32xf32>
    %418 = math.tanh %417 : vector<4x32xf32>
    %419 = arith.mulf %414, %418 : vector<4x32xf32>
    %420 = arith.addf %412, %419 : vector<4x32xf32>
    %421 = vector.extract_strided_slice %237 {offsets = [28, 0], sizes = [4, 32], strides = [1, 1]} : vector<32x32xf32> to vector<4x32xf32>
    %422 = vector.broadcast %232 : vector<1x32xf32> to vector<4x32xf32>
    %423 = arith.mulf %422, %420 : vector<4x32xf32>
    %424 = arith.addf %421, %423 : vector<4x32xf32>
    %425 = arith.negf %424 : vector<4x32xf32>
    %426 = math.exp %425 : vector<4x32xf32>
    %cst_64 = arith.constant 1.000000e+00 : f32
    %427 = vector.broadcast %cst_64 : f32 to vector<4x32xf32>
    %428 = arith.addf %427, %426 : vector<4x32xf32>
    %429 = arith.divf %427, %428 : vector<4x32xf32>
    %430 = vector.extract_strided_slice %240 {offsets = [28, 0], sizes = [4, 32], strides = [1, 1]} : vector<32x32xf32> to vector<4x32xf32>
    %431 = vector.broadcast %233 : vector<1x32xf32> to vector<4x32xf32>
    %432 = arith.mulf %431, %420 : vector<4x32xf32>
    %433 = arith.addf %430, %432 : vector<4x32xf32>
    %434 = math.tanh %433 : vector<4x32xf32>
    %cst_65 = arith.constant 1.000000e+00 : f32
    %435 = vector.broadcast %cst_65 : f32 to vector<4x32xf32>
    %436 = arith.addf %434, %435 : vector<4x32xf32>
    %437 = arith.mulf %429, %420 : vector<4x32xf32>
    %cst_66 = arith.constant 1.000000e+00 : f32
    %438 = vector.broadcast %cst_66 : f32 to vector<4x32xf32>
    %439 = arith.subf %438, %429 : vector<4x32xf32>
    %440 = vector.extract_strided_slice %243 {offsets = [28, 0], sizes = [4, 32], strides = [1, 1]} : vector<32x32xf32> to vector<4x32xf32>
    %441 = arith.mulf %436, %420 : vector<4x32xf32>
    %442 = arith.addf %440, %441 : vector<4x32xf32>
    %443 = math.tanh %442 : vector<4x32xf32>
    %444 = arith.mulf %439, %443 : vector<4x32xf32>
    %445 = arith.addf %437, %444 : vector<4x32xf32>
    %c1_67 = arith.constant 1 : index
    %c0_68 = arith.constant 0 : index
    %c0_69 = arith.constant 0 : index
    %446 = vector.load %arg11[%c1_67, %c0_68, %c0_69] : memref<2x4x32xf32, #tpu.memory_space<vmem>>, vector<1x4x32xf32>
    %447 = vector.shape_cast %446 : vector<1x4x32xf32> to vector<4x32xf32>
    %448 = vector.shape_cast %445 : vector<4x32xf32> to vector<1x4x32xf32>
    tpu.vector_store %arg11[%c1_67, %c0_68, %c0_69], %448 {strides = array<i32>} : memref<2x4x32xf32, #tpu.memory_space<vmem>>, vector<1x4x32xf32>,
    %449 = tpu.concatenate %270, %295, %320, %345, %370, %395, %420, %445 in 0 : vector<4x32xf32>, vector<4x32xf32>, vector<4x32xf32>, vector<4x32xf32>, vector<4x32xf32>, vector<4x32xf32>, vector<4x32xf32>, vector<4x32xf32> -> vector<32x32xf32>
    %c0_i32_70 = arith.constant 0 : i32
    %450 = arith.cmpi eq, %arg0, %c0_i32_70 : i32
    %451 = arith.extui %450 : i1 to i32
    %c0_i32_71 = arith.constant 0 : i32
    %452 = arith.cmpi ne, %451, %c0_i32_71 : i32
    scf.if %452 {
      %c0_79 = arith.constant 0 : index
      %c0_80 = arith.constant 0 : index
      %c0_81 = arith.constant 0 : index
      %459 = vector.load %arg10[%c0_79, %c0_80, %c0_81] : memref<2x4x32xf32, #tpu.memory_space<vmem>>, vector<1x4x32xf32>
      %460 = vector.shape_cast %459 : vector<1x4x32xf32> to vector<4x32xf32>
      %461 = vector.shape_cast %222 : vector<4x32xf32> to vector<1x4x32xf32>
      tpu.vector_store %arg10[%c0_79, %c0_80, %c0_81], %461 {strides = array<i32>} : memref<2x4x32xf32, #tpu.memory_space<vmem>>, vector<1x4x32xf32>,
      %c1_82 = arith.constant 1 : index
      %c0_83 = arith.constant 0 : index
      %c0_84 = arith.constant 0 : index
      %462 = vector.load %arg10[%c1_82, %c0_83, %c0_84] : memref<2x4x32xf32, #tpu.memory_space<vmem>>, vector<1x4x32xf32>
      %463 = vector.shape_cast %462 : vector<1x4x32xf32> to vector<4x32xf32>
      %464 = vector.shape_cast %445 : vector<4x32xf32> to vector<1x4x32xf32>
      tpu.vector_store %arg10[%c1_82, %c0_83, %c0_84], %464 {strides = array<i32>} : memref<2x4x32xf32, #tpu.memory_space<vmem>>, vector<1x4x32xf32>,
    } else {
    }
    %c0_72 = arith.constant 0 : index
    %c0_73 = arith.constant 0 : index
    %453 = vector.load %arg7[%c0_72, %c0_73] : memref<32x8xf32, #tpu.memory_space<vmem>>, vector<32x8xf32>
    %cst_74 = arith.constant dense<0.000000e+00> : vector<32x8xf32>
    %454 = tpu.matmul %449, %453, %cst_74 {dimension_numbers = #tpu.dot_dimension_numbers<[1], [0], [0], [1], [0, 0, 1, 1], [], []>} : vector<32x32xf32>, vector<32x8xf32>, vector<32x8xf32> -> vector<32x8xf32>
    %c0_75 = arith.constant 0 : index
    %c0_76 = arith.constant 0 : index
    %455 = vector.load %arg8[%c0_75, %c0_76] : memref<1x8xf32, #tpu.memory_space<vmem>>, vector<1x8xf32>
    %456 = vector.broadcast %455 : vector<1x8xf32> to vector<32x8xf32>
    %457 = arith.addf %454, %456 : vector<32x8xf32>
    %c0_77 = arith.constant 0 : index
    %c0_78 = arith.constant 0 : index
    %458 = vector.load %arg9[%c0_77, %c0_78] : memref<32x8xf32, #tpu.memory_space<vmem>>, vector<32x8xf32>
    tpu.vector_store %arg9[%c0_77, %c0_78], %457 {strides = array<i32>} : memref<32x8xf32, #tpu.memory_space<vmem>>, vector<32x8xf32>,
    return
  }
  func.func @transform_0(%arg0: i32) -> (i32, i32) {
    %c0_i32 = arith.constant 0 : i32
    %c0_i32_0 = arith.constant 0 : i32
    return %arg0, %c0_i32 : i32, i32
  }
  func.func @transform_1(%arg0: i32) -> (i32, i32, i32) {
    %c0_i32 = arith.constant 0 : i32
    %c0_i32_0 = arith.constant 0 : i32
    %c0_i32_1 = arith.constant 0 : i32
    %c0_i32_2 = arith.constant 0 : i32
    return %c0_i32, %c0_i32_0, %c0_i32_1 : i32, i32, i32
  }
  func.func @transform_2(%arg0: i32) -> (i32, i32) {
    %c0_i32 = arith.constant 0 : i32
    %c0_i32_0 = arith.constant 0 : i32
    %c0_i32_1 = arith.constant 0 : i32
    return %c0_i32, %c0_i32_0 : i32, i32
  }
  func.func @transform_3(%arg0: i32) -> (i32, i32) {
    %c0_i32 = arith.constant 0 : i32
    %c0_i32_0 = arith.constant 0 : i32
    %c0_i32_1 = arith.constant 0 : i32
    return %c0_i32, %c0_i32_0 : i32, i32
  }
  func.func @transform_4(%arg0: i32) -> (i32, i32) {
    %c0_i32 = arith.constant 0 : i32
    %c0_i32_0 = arith.constant 0 : i32
    %c0_i32_1 = arith.constant 0 : i32
    return %c0_i32, %c0_i32_0 : i32, i32
  }
  func.func @transform_5(%arg0: i32) -> (i32, i32) {
    %c0_i32 = arith.constant 0 : i32
    %c0_i32_0 = arith.constant 0 : i32
    %c0_i32_1 = arith.constant 0 : i32
    return %c0_i32, %c0_i32_0 : i32, i32
  }
  func.func @transform_6(%arg0: i32) -> (i32, i32) {
    %c0_i32 = arith.constant 0 : i32
    %c0_i32_0 = arith.constant 0 : i32
    %c0_i32_1 = arith.constant 0 : i32
    return %c0_i32, %c0_i32_0 : i32, i32
  }
  func.func @transform_7(%arg0: i32) -> (i32, i32) {
    %c0_i32 = arith.constant 0 : i32
    %c0_i32_0 = arith.constant 0 : i32
    %c0_i32_1 = arith.constant 0 : i32
    return %c0_i32, %c0_i32_0 : i32, i32
  }
  func.func @transform_8(%arg0: i32) -> (i32, i32) {
    %c0_i32 = arith.constant 0 : i32
    %c0_i32_0 = arith.constant 0 : i32
    return %arg0, %c0_i32 : i32, i32
  }
  func.func @transform_9(%arg0: i32) -> (i32, i32, i32) {
    %c0_i32 = arith.constant 0 : i32
    %c0_i32_0 = arith.constant 0 : i32
    %c0_i32_1 = arith.constant 0 : i32
    %c0_i32_2 = arith.constant 0 : i32
    return %c0_i32, %c0_i32_0, %c0_i32_1 : i32, i32, i32
  }
}

</mosaic_0001>

<llo_original>
// kernel: tpu_custom_call.1
$region0: #{tpu_custom_call.1}
  #allocation0 [shape = 'u32[]', space=smem, size = 0x4, offset = 0x4, fixed_abs, tag = 'smem constant byte address 0x4 - core index']
  #allocation1 [shape = 'u32[144,128]{1,0:T(1,128)}', space=vmem, size = 0x12000, scoped, tag = 'internal scratch']
  #allocation2 [shape = 'f32[2,4,32]{2,1,0:T(4,128)}', space=vmem, size = 0x1000, scoped, tag = 'scratch operand']
  %s0 = inlined_call_operand.vmem [shape: f32[32,16], index: 0, kind: input, shape index: {}]
  %s1 = inlined_call_operand.vmem [shape: f32[2,4,32], index: 1, kind: input, shape index: {}]
  %s2 = inlined_call_operand.vmem [shape: f32[16,96], index: 2, kind: input, shape index: {}]
  %s3 = inlined_call_operand.vmem [shape: f32[32,96], index: 3, kind: input, shape index: {}]
  %s4 = inlined_call_operand.vmem [shape: f32[5,32], index: 4, kind: input, shape index: {}]
  %s5 = inlined_call_operand.vmem [shape: f32[5,32], index: 5, kind: input, shape index: {}]
  %s6 = inlined_call_operand.vmem [shape: f32[32,8], index: 6, kind: input, shape index: {}]
  %s7 = inlined_call_operand.vmem [shape: f32[1,8], index: 7, kind: input, shape index: {}]
  %s8 = inlined_call_operand.vmem [shape: f32[32,8], index: 8, kind: output, shape index: {0}]
  %s9 = inlined_call_operand.hbm [shape: f32[2,4,32], index: 9, kind: output, shape index: {1}]
  %10 = xla_tuple %s8, %s9
  %s11 = sld [smem:[#allocation0]]
  $region58: #{tpu_custom_call.1} parent=0
    _
  %s13 = ssub.s32 1, %s11
  %s14 = scalar_select 0, %s13, %s11
  $region1: #{tpu_custom_call.1} parent=0
    #allocation3 [shape = 'u8[4096]{0}', space=vmem, size = 0x1000, scoped, tag = 'output window, operand 1, single buffered']
    #allocation4 [shape = 's32[1]{0}', space=sflag, size = 0x4, scoped, tag = 'scoped memory for tpu_custom_call.1']
    %15 = vsyncpa [#allocation4], 0
    // Predicated region
    $region2: #{tpu_custom_call.1} parent=1 // pred_check
      _
    $region3: #{tpu_custom_call.1} parent=1 // pred_check_branch
      %17 = sbr.rel (0) target = $region5
    $region4: #{tpu_custom_call.1} parent=1 // pred_region
      _
    $region5: #{tpu_custom_call.1} parent=1 // pred_fallthru
      _
    // Predicated region
    $region6: #{tpu_custom_call.1} parent=1 // pred_check
      _
    $region7: #{tpu_custom_call.1} parent=1 // pred_check_branch
      %19 = sbr.rel (0) target = $region9
    $region8: #{tpu_custom_call.1} parent=1 // pred_region
      _
    $region9: #{tpu_custom_call.1} parent=1 // pred_fallthru
      _
    // Predicated region
    $region10: #{tpu_custom_call.1} parent=1 // pred_check
      _
    $region11: #{tpu_custom_call.1} parent=1 // pred_check_branch
      %21 = sbr.rel (0) target = $region13
    $region12: #{tpu_custom_call.1} parent=1 // pred_region
      _
    $region13: #{tpu_custom_call.1} parent=1 // pred_fallthru
      _
    // Predicated region
    $region14: #{tpu_custom_call.1} parent=1 // pred_check
      _
    $region15: #{tpu_custom_call.1} parent=1 // pred_check_branch
      %23 = sbr.rel (0) target = $region17
    $region16: #{tpu_custom_call.1} parent=1 // pred_region
      _
    $region17: #{tpu_custom_call.1} parent=1 // pred_fallthru
      _
    // Predicated region
    $region18: #{tpu_custom_call.1} parent=1 // pred_check
      _
    $region19: #{tpu_custom_call.1} parent=1 // pred_check_branch
      %25 = sbr.rel (0) target = $region21
    $region20: #{tpu_custom_call.1} parent=1 // pred_region
      _
    $region21: #{tpu_custom_call.1} parent=1 // pred_fallthru
      _
    // Predicated region
    $region22: #{tpu_custom_call.1} parent=1 // pred_check
      _
    $region23: #{tpu_custom_call.1} parent=1 // pred_check_branch
      %27 = sbr.rel (0) target = $region25
    $region24: #{tpu_custom_call.1} parent=1 // pred_region
      _
    $region25: #{tpu_custom_call.1} parent=1 // pred_fallthru
      _
    // Predicated region
    $region26: #{tpu_custom_call.1} parent=1 // pred_check
      _
    $region27: #{tpu_custom_call.1} parent=1 // pred_check_branch
      %29 = sbr.rel (0) target = $region29
    $region28: #{tpu_custom_call.1} parent=1 // pred_region
      _
    $region29: #{tpu_custom_call.1} parent=1 // pred_fallthru
      _
    // Predicated region
    $region30: #{tpu_custom_call.1} parent=1 // pred_check
      _
    $region31: #{tpu_custom_call.1} parent=1 // pred_check_branch
      %31 = sbr.rel (0) target = $region33
    $region32: #{tpu_custom_call.1} parent=1 // pred_region
      _
    $region33: #{tpu_custom_call.1} parent=1 // pred_fallthru
      _
    %p32 = scmp.eq.s32.totalorder 0, 0
    // Predicated region
    $region34: #{tpu_custom_call.1} parent=1 // pred_check
      %p33 = pneg %p32
    $region35: #{tpu_custom_call.1} parent=1 // pred_check_branch
      %35 = sbr.rel (%p33) target = $region37
    $region36: #{tpu_custom_call.1} parent=1 // pred_region
      %v36 = vld [vmem:[%s1] sm:$0xf]
      %v37 = vld [vmem:[%s1 + $0x4] sm:$0xf]
      %vm38 = vcmask 257024
      %39 = vst.msk [vmem:[#allocation2] sm:$0xf] %vm38, %v36
      %40 = vst.msk [vmem:[#allocation2 + $0x4] sm:$0xf] %vm38, %v37
    $region37: #{tpu_custom_call.1} parent=1 // pred_fallthru
      _
    %v41 = vld [vmem:[%s0] sm:$0xff]
    %v42 = vld [vmem:[%s0 + $0x8] sm:$0xff]
    %v43 = vld [vmem:[%s0 + $0x10] sm:$0xff]
    %v44 = vld [vmem:[%s0 + $0x18] sm:$0xff]
    %v45 = vld [vmem:[%s2] sm:$0xff]
    %v46 = vld [vmem:[%s2 + $0x8] sm:$0xff]
    %v47 = vld [vmem:[%s4] sm:$0x1f]
    %vm48 = vcmask 130048
    %v50 = vsel %vm48, %v41, 0
    %v53 = vsel %vm48, %v42, 0
    %v56 = vsel %vm48, %v43, 0
    %v59 = vsel %vm48, %v44, 0
    %61 = vmatprep.subr.mxu0 0.0
    %62 = vmatpush1.msra.mxu0 0.0
    %63 = vmatprep.subr.mxu0 0.0
    %64 = vmatpush1.msra.mxu0 0.0
    %65 = vmatprep.subr.mxu0 0.0
    %66 = vmatpush1.msra.mxu0 0.0
    %67 = vmatprep.subr.mxu0 0.0
    %68 = vmatpush1.msra.mxu0 0.0
    %69 = vmatprep.subr.mxu0 0.0
    %70 = vmatpush1.msra.mxu0 0.0
    %71 = vmatprep.subr.mxu0 0.0
    %72 = vmatpush1.msra.mxu0 0.0
    %73 = vmatprep.subr.mxu0 0.0
    %74 = vmatpush1.msra.mxu0 0.0
    %75 = vmatprep.subr.mxu0 0.0
    %76 = vmatpush1.msra.mxu0 0.0
    %77 = vmatprep.subr.mxu0 0.0
    %78 = vmatpush1.msra.mxu0 0.0
    %79 = vmatprep.subr.mxu0 0.0
    %80 = vmatpush1.msra.mxu0 0.0
    %81 = vmatprep.subr.mxu0 0.0
    %82 = vmatpush1.msra.mxu0 0.0
    %83 = vmatprep.subr.mxu0 0.0
    %84 = vmatpush1.msra.mxu0 0.0
    %85 = vmatprep.subr.mxu0 0.0
    %86 = vmatpush1.msra.mxu0 0.0
    %87 = vmatprep.subr.mxu0 0.0
    %88 = vmatpush1.msra.mxu0 0.0
    %89 = vmatprep.subr.mxu0 0.0
    %90 = vmatpush1.msra.mxu0 %v46
    %91 = vmatprep.subr.mxu0 0.0
    %92 = vmatpush1.msra.mxu0 %v45
    %93 = vmatprep.subr.mxu0 0.0
    %94 = vmatpush2.msra.mxu0 0.0
    %95 = vmatprep.subr.mxu0 0.0
    %96 = vmatpush2.msra.mxu0 0.0
    %97 = vmatprep.subr.mxu0 0.0
    %98 = vmatpush2.msra.mxu0 0.0
    %99 = vmatprep.subr.mxu0 0.0
    %100 = vmatpush2.msra.mxu0 0.0
    %101 = vmatprep.subr.mxu0 0.0
    %102 = vmatpush2.msra.mxu0 0.0
    %103 = vmatprep.subr.mxu0 0.0
    %104 = vmatpush2.msra.mxu0 0.0
    %105 = vmatprep.subr.mxu0 0.0
    %106 = vmatpush2.msra.mxu0 0.0
    %107 = vmatprep.subr.mxu0 0.0
    %108 = vmatpush2.msra.mxu0 0.0
    %109 = vmatprep.subr.mxu0 0.0
    %110 = vmatpush2.msra.mxu0 0.0
    %111 = vmatprep.subr.mxu0 0.0
    %112 = vmatpush2.msra.mxu0 0.0
    %113 = vmatprep.subr.mxu0 0.0
    %114 = vmatpush2.msra.mxu0 0.0
    %115 = vmatprep.subr.mxu0 0.0
    %116 = vmatpush2.msra.mxu0 0.0
    %117 = vmatprep.subr.mxu0 0.0
    %118 = vmatpush2.msra.mxu0 0.0
    %119 = vmatprep.subr.mxu0 0.0
    %120 = vmatpush2.msra.mxu0 0.0
    %121 = vmatprep.subr.mxu0 0.0
    %122 = vmatpush2.msra.mxu0 0.0
    %123 = vmatprep.subr.mxu0 0.0
    %124 = vmatpush2.msra.mxu0 0.0
    %125 = vmatprep.mubr.f32.mxu0 0.0
    %126 = vmatmul.mubr.f32.gmra.mxu0 %v50
    %v127 = vpop.f32.mrf.mxu0
    %v128 = vadd.f32 0.0, %v127
    %v129 = vpop.f32.mrf.mxu0
    %130 = vmatprep.mubr.f32.mxu0 0.0
    %131 = vmatmul.mubr.f32.gmra.mxu0 %v53
    %v132 = vpop.f32.mrf.mxu0
    %v133 = vadd.f32 0.0, %v132
    %v134 = vpop.f32.mrf.mxu0
    %135 = vmatprep.mubr.f32.mxu0 0.0
    %136 = vmatmul.mubr.f32.gmra.mxu0 %v56
    %v137 = vpop.f32.mrf.mxu0
    %v138 = vadd.f32 0.0, %v137
    %v139 = vpop.f32.mrf.mxu0
    %140 = vmatprep.mubr.f32.mxu0 0.0
    %141 = vmatmul.mubr.f32.gmra.mxu0 %v59
    %v142 = vpop.f32.mrf.mxu0
    %v143 = vadd.f32 0.0, %v142
    %v144 = vpop.f32.mrf.mxu0
    %145 = vdwg.mxu0
    %v146 = vlaneseq
    %v147 = vshrl.u32 %v146, 7
    %v148 = vsub.s32 0, %v147
    %v149 = vrot.slane %v47, %v148
    %v150 = vadd.f32 %v128, %v149
    %v151 = vadd.f32 %v133, %v149
    %v152 = vadd.f32 %v138, %v149
    %v153 = vadd.f32 %v143, %v149
    %v154 = vlaneseq
    %v155 = vshrl.u32 %v154, 7
    %v156 = vsub.s32 1, %v155
    %v157 = vrot.slane %v47, %v156
    %159 = vrot.lane.b32.xlu0 %v157, 32
    %v160 = vpop.permute.xlu0 %159
    %v162 = vadd.f32 %v128, %v160
    %v163 = vadd.f32 %v133, %v160
    %v164 = vadd.f32 %v138, %v160
    %v165 = vadd.f32 %v143, %v160
    %v166 = vlaneseq
    %v167 = vshrl.u32 %v166, 7
    %v168 = vsub.s32 2, %v167
    %v169 = vrot.slane %v47, %v168
    %171 = vrot.lane.b32.xlu0 %v169, 64
    %v172 = vpop.permute.xlu0 %171
    %v174 = vadd.f32 %v128, %v172
    %v175 = vadd.f32 %v133, %v172
    %v176 = vadd.f32 %v138, %v172
    %v177 = vadd.f32 %v143, %v172
    %v178 = vld [vmem:[#allocation2] sm:$0xf]
    %v179 = vlaneseq
    %v180 = vshrl.u32 %v179, 7
    %v181 = vsub.s32 3, %v180
    %v182 = vrot.slane %v47, %v181
    %v183 = vmul.f32 %v182, %v178
    %v184 = vadd.f32 %v150, %v183
    %v185 = vxor.u32 %v184, 2147483648
    %v186 = vmul.f32 %v185, 1.442695
    %v187 = vpow.pop %v186
    %v188 = vadd.f32 %v187, 1.0
    %v189 = vrcp.pop %v188
    %v190 = vmul.f32 1.0, %v189
    %v191 = vlaneseq
    %v192 = vshrl.u32 %v191, 7
    %v193 = vsub.s32 4, %v192
    %v194 = vrot.slane %v47, %v193
    %v195 = vmul.f32 %v194, %v178
    %197 = vrot.lane.b32.xlu0 %v195, 32
    %v198 = vpop.permute.xlu0 %197
    %v200 = vadd.f32 %v162, %v198
    %v201 = vtanh.pop %v200
    %v202 = vadd.f32 %v201, 1.0
    %v203 = vmul.f32 %v190, %v178
    %v204 = vsub.f32 1.0, %v190
    %206 = vrot.lane.b32.xlu0 %v178, 32
    %v207 = vpop.permute.xlu0 %206
    %v209 = vmul.f32 %v202, %v207
    %211 = vrot.lane.b32.xlu0 %v209, 32
    %v212 = vpop.permute.xlu0 %211
    %v214 = vadd.f32 %v174, %v212
    %v215 = vtanh.pop %v214
    %217 = vrot.lane.b32.xlu0 %v215, 64
    %v218 = vpop.permute.xlu0 %217
    %v220 = vmul.f32 %v204, %v218
    %v221 = vadd.f32 %v203, %v220
    %v222 = vmul.f32 %v182, %v221
    %v224 = vrot.slane %v222, 4
    %v226 = vadd.f32 %v150, %v224
    %v227 = vxor.u32 %v226, 2147483648
    %v228 = vmul.f32 %v227, 1.442695
    %v229 = vpow.pop %v228
    %v230 = vadd.f32 %v229, 1.0
    %v231 = vrcp.pop %v230
    %v232 = vmul.f32 1.0, %v231
    %v233 = vmul.f32 %v194, %v221
    %v235 = vrot.slane %v233, 4
    %236 = vrot.lane.b32.xlu0 %v235, 32
    %v237 = vpop.permute.xlu0 %236
    %v239 = vadd.f32 %v162, %v237
    %v240 = vtanh.pop %v239
    %v241 = vadd.f32 %v240, 1.0
    %v243 = vrot.slane %v221, 4
    %v245 = vmul.f32 %v232, %v243
    %v246 = vsub.f32 1.0, %v232
    %247 = vrot.lane.b32.xlu0 %v243, 32
    %v248 = vpop.permute.xlu0 %247
    %v250 = vmul.f32 %v241, %v248
    %252 = vrot.lane.b32.xlu0 %v250, 32
    %v253 = vpop.permute.xlu0 %252
    %v255 = vadd.f32 %v174, %v253
    %v256 = vtanh.pop %v255
    %258 = vrot.lane.b32.xlu0 %v256, 64
    %v259 = vpop.permute.xlu0 %258
    %v261 = vmul.f32 %v246, %v259
    %v262 = vadd.f32 %v245, %v261
    %v263 = vmul.f32 %v182, %v262
    %v265 = vrot.slane %v263, 4
    %v267 = vadd.f32 %v151, %v265
    %v268 = vxor.u32 %v267, 2147483648
    %v269 = vmul.f32 %v268, 1.442695
    %v270 = vpow.pop %v269
    %v271 = vadd.f32 %v270, 1.0
    %v272 = vrcp.pop %v271
    %v273 = vmul.f32 1.0, %v272
    %v274 = vmul.f32 %v194, %v262
    %v276 = vrot.slane %v274, 4
    %277 = vrot.lane.b32.xlu0 %v276, 32
    %v278 = vpop.permute.xlu0 %277
    %v280 = vadd.f32 %v163, %v278
    %v281 = vtanh.pop %v280
    %v282 = vadd.f32 %v281, 1.0
    %v284 = vrot.slane %v262, 4
    %v286 = vmul.f32 %v273, %v284
    %v287 = vsub.f32 1.0, %v273
    %288 = vrot.lane.b32.xlu0 %v284, 32
    %v289 = vpop.permute.xlu0 %288
    %v291 = vmul.f32 %v282, %v289
    %293 = vrot.lane.b32.xlu0 %v291, 32
    %v294 = vpop.permute.xlu0 %293
    %v296 = vadd.f32 %v175, %v294
    %v297 = vtanh.pop %v296
    %299 = vrot.lane.b32.xlu0 %v297, 64
    %v300 = vpop.permute.xlu0 %299
    %v302 = vmul.f32 %v287, %v300
    %v303 = vadd.f32 %v286, %v302
    %v304 = vmul.f32 %v182, %v303
    %v306 = vrot.slane %v304, 4
    %v308 = vadd.f32 %v151, %v306
    %v309 = vxor.u32 %v308, 2147483648
    %v310 = vmul.f32 %v309, 1.442695
    %v311 = vpow.pop %v310
    %v312 = vadd.f32 %v311, 1.0
    %v313 = vrcp.pop %v312
    %v314 = vmul.f32 1.0, %v313
    %v315 = vmul.f32 %v194, %v303
    %v317 = vrot.slane %v315, 4
    %318 = vrot.lane.b32.xlu0 %v317, 32
    %v319 = vpop.permute.xlu0 %318
    %v321 = vadd.f32 %v163, %v319
    %v322 = vtanh.pop %v321
    %v323 = vadd.f32 %v322, 1.0
    %v325 = vrot.slane %v303, 4
    %v327 = vmul.f32 %v314, %v325
    %v328 = vsub.f32 1.0, %v314
    %329 = vrot.lane.b32.xlu0 %v325, 32
    %v330 = vpop.permute.xlu0 %329
    %v332 = vmul.f32 %v323, %v330
    %334 = vrot.lane.b32.xlu0 %v332, 32
    %v335 = vpop.permute.xlu0 %334
    %v337 = vadd.f32 %v175, %v335
    %v338 = vtanh.pop %v337
    %340 = vrot.lane.b32.xlu0 %v338, 64
    %v341 = vpop.permute.xlu0 %340
    %v343 = vmul.f32 %v328, %v341
    %v344 = vadd.f32 %v327, %v343
    %v345 = vmul.f32 %v182, %v344
    %v347 = vrot.slane %v345, 4
    %v349 = vadd.f32 %v152, %v347
    %v350 = vxor.u32 %v349, 2147483648
    %v351 = vmul.f32 %v350, 1.442695
    %v352 = vpow.pop %v351
    %v353 = vadd.f32 %v352, 1.0
    %v354 = vrcp.pop %v353
    %v355 = vmul.f32 1.0, %v354
    %v356 = vmul.f32 %v194, %v344
    %v358 = vrot.slane %v356, 4
    %359 = vrot.lane.b32.xlu0 %v358, 32
    %v360 = vpop.permute.xlu0 %359
    %v362 = vadd.f32 %v164, %v360
    %v363 = vtanh.pop %v362
    %v364 = vadd.f32 %v363, 1.0
    %v366 = vrot.slane %v344, 4
    %v368 = vmul.f32 %v355, %v366
    %v369 = vsub.f32 1.0, %v355
    %370 = vrot.lane.b32.xlu0 %v366, 32
    %v371 = vpop.permute.xlu0 %370
    %v373 = vmul.f32 %v364, %v371
    %375 = vrot.lane.b32.xlu0 %v373, 32
    %v376 = vpop.permute.xlu0 %375
    %v378 = vadd.f32 %v176, %v376
    %v379 = vtanh.pop %v378
    %381 = vrot.lane.b32.xlu0 %v379, 64
    %v382 = vpop.permute.xlu0 %381
    %v384 = vmul.f32 %v369, %v382
    %v385 = vadd.f32 %v368, %v384
    %v386 = vmul.f32 %v182, %v385
    %v388 = vrot.slane %v386, 4
    %v390 = vadd.f32 %v152, %v388
    %v391 = vxor.u32 %v390, 2147483648
    %v392 = vmul.f32 %v391, 1.442695
    %v393 = vpow.pop %v392
    %v394 = vadd.f32 %v393, 1.0
    %v395 = vrcp.pop %v394
    %v396 = vmul.f32 1.0, %v395
    %v397 = vmul.f32 %v194, %v385
    %v399 = vrot.slane %v397, 4
    %400 = vrot.lane.b32.xlu0 %v399, 32
    %v401 = vpop.permute.xlu0 %400
    %v403 = vadd.f32 %v164, %v401
    %v404 = vtanh.pop %v403
    %v405 = vadd.f32 %v404, 1.0
    %v407 = vrot.slane %v385, 4
    %v409 = vmul.f32 %v396, %v407
    %v410 = vsub.f32 1.0, %v396
    %411 = vrot.lane.b32.xlu0 %v407, 32
    %v412 = vpop.permute.xlu0 %411
    %v414 = vmul.f32 %v405, %v412
    %416 = vrot.lane.b32.xlu0 %v414, 32
    %v417 = vpop.permute.xlu0 %416
    %v419 = vadd.f32 %v176, %v417
    %v420 = vtanh.pop %v419
    %422 = vrot.lane.b32.xlu0 %v420, 64
    %v423 = vpop.permute.xlu0 %422
    %v425 = vmul.f32 %v410, %v423
    %v426 = vadd.f32 %v409, %v425
    %v427 = vmul.f32 %v182, %v426
    %v429 = vrot.slane %v427, 4
    %v431 = vadd.f32 %v153, %v429
    %v432 = vxor.u32 %v431, 2147483648
    %v433 = vmul.f32 %v432, 1.442695
    %v434 = vpow.pop %v433
    %v435 = vadd.f32 %v434, 1.0
    %v436 = vrcp.pop %v435
    %v437 = vmul.f32 1.0, %v436
    %v438 = vmul.f32 %v194, %v426
    %v440 = vrot.slane %v438, 4
    %441 = vrot.lane.b32.xlu0 %v440, 32
    %v442 = vpop.permute.xlu0 %441
    %v444 = vadd.f32 %v165, %v442
    %v445 = vtanh.pop %v444
    %v446 = vadd.f32 %v445, 1.0
    %v448 = vrot.slane %v426, 4
    %v450 = vmul.f32 %v437, %v448
    %v451 = vsub.f32 1.0, %v437
    %452 = vrot.lane.b32.xlu0 %v448, 32
    %v453 = vpop.permute.xlu0 %452
    %v455 = vmul.f32 %v446, %v453
    %457 = vrot.lane.b32.xlu0 %v455, 32
    %v458 = vpop.permute.xlu0 %457
    %v460 = vadd.f32 %v177, %v458
    %v461 = vtanh.pop %v460
    %463 = vrot.lane.b32.xlu0 %v461, 64
    %v464 = vpop.permute.xlu0 %463
    %v466 = vmul.f32 %v451, %v464
    %v467 = vadd.f32 %v450, %v466
    %v468 = vmul.f32 %v182, %v467
    %v470 = vrot.slane %v468, 4
    %v472 = vadd.f32 %v153, %v470
    %v473 = vxor.u32 %v472, 2147483648
    %v474 = vmul.f32 %v473, 1.442695
    %v475 = vpow.pop %v474
    %v476 = vadd.f32 %v475, 1.0
    %v477 = vrcp.pop %v476
    %v478 = vmul.f32 1.0, %v477
    %v479 = vmul.f32 %v194, %v467
    %v481 = vrot.slane %v479, 4
    %482 = vrot.lane.b32.xlu0 %v481, 32
    %v483 = vpop.permute.xlu0 %482
    %v485 = vadd.f32 %v165, %v483
    %v486 = vtanh.pop %v485
    %v487 = vadd.f32 %v486, 1.0
    %v489 = vrot.slane %v467, 4
    %v491 = vmul.f32 %v478, %v489
    %v492 = vsub.f32 1.0, %v478
    %493 = vrot.lane.b32.xlu0 %v489, 32
    %v494 = vpop.permute.xlu0 %493
    %v496 = vmul.f32 %v487, %v494
    %498 = vrot.lane.b32.xlu0 %v496, 32
    %v499 = vpop.permute.xlu0 %498
    %v501 = vadd.f32 %v177, %v499
    %v502 = vtanh.pop %v501
    %504 = vrot.lane.b32.xlu0 %v502, 64
    %v505 = vpop.permute.xlu0 %504
    %v507 = vmul.f32 %v492, %v505
    %v508 = vadd.f32 %v491, %v507
    %vm509 = vcmask 261124
    %510 = vst.msk [vmem:[#allocation2 - $0x4] sm:$0xf0] %vm509, %v508
    %vm511 = vcmask 1043456
    %v512 = vsel %vm511, %v221, %v262
    %v513 = vsel %vm511, %v303, %v344
    %v514 = vsel %vm511, %v385, %v426
    %v515 = vsel %vm511, %v467, %v508
    %v516 = vld [vmem:[%s3] sm:$0xff]
    %v517 = vld [vmem:[%s3 + $0x8] sm:$0xff]
    %v518 = vld [vmem:[%s3 + $0x10] sm:$0xff]
    %v519 = vld [vmem:[%s3 + $0x18] sm:$0xff]
    %v520 = vld [vmem:[%s5] sm:$0x1f]
    %vm521 = vcmask 261120
    %v523 = vsel %vm521, %v512, 0
    %v526 = vsel %vm521, %v513, 0
    %v529 = vsel %vm521, %v514, 0
    %v532 = vsel %vm521, %v515, 0
    %534 = vmatprep.subr.mxu0 0.0
    %535 = vmatpush1.msra.mxu0 0.0
    %536 = vmatprep.subr.mxu0 0.0
    %537 = vmatpush1.msra.mxu0 0.0
    %538 = vmatprep.subr.mxu0 0.0
    %539 = vmatpush1.msra.mxu0 0.0
    %540 = vmatprep.subr.mxu0 0.0
    %541 = vmatpush1.msra.mxu0 0.0
    %542 = vmatprep.subr.mxu0 0.0
    %543 = vmatpush1.msra.mxu0 0.0
    %544 = vmatprep.subr.mxu0 0.0
    %545 = vmatpush1.msra.mxu0 0.0
    %546 = vmatprep.subr.mxu0 0.0
    %547 = vmatpush1.msra.mxu0 0.0
    %548 = vmatprep.subr.mxu0 0.0
    %549 = vmatpush1.msra.mxu0 0.0
    %550 = vmatprep.subr.mxu0 0.0
    %551 = vmatpush1.msra.mxu0 0.0
    %552 = vmatprep.subr.mxu0 0.0
    %553 = vmatpush1.msra.mxu0 0.0
    %554 = vmatprep.subr.mxu0 0.0
    %555 = vmatpush1.msra.mxu0 0.0
    %556 = vmatprep.subr.mxu0 0.0
    %557 = vmatpush1.msra.mxu0 0.0
    %558 = vmatprep.subr.mxu0 0.0
    %559 = vmatpush1.msra.mxu0 %v519
    %560 = vmatprep.subr.mxu0 0.0
    %561 = vmatpush1.msra.mxu0 %v518
    %562 = vmatprep.subr.mxu0 0.0
    %563 = vmatpush1.msra.mxu0 %v517
    %564 = vmatprep.subr.mxu0 0.0
    %565 = vmatpush1.msra.mxu0 %v516
    %566 = vmatprep.subr.mxu0 0.0
    %567 = vmatpush2.msra.mxu0 0.0
    %568 = vmatprep.subr.mxu0 0.0
    %569 = vmatpush2.msra.mxu0 0.0
    %570 = vmatprep.subr.mxu0 0.0
    %571 = vmatpush2.msra.mxu0 0.0
    %572 = vmatprep.subr.mxu0 0.0
    %573 = vmatpush2.msra.mxu0 0.0
    %574 = vmatprep.subr.mxu0 0.0
    %575 = vmatpush2.msra.mxu0 0.0
    %576 = vmatprep.subr.mxu0 0.0
    %577 = vmatpush2.msra.mxu0 0.0
    %578 = vmatprep.subr.mxu0 0.0
    %579 = vmatpush2.msra.mxu0 0.0
    %580 = vmatprep.subr.mxu0 0.0
    %581 = vmatpush2.msra.mxu0 0.0
    %582 = vmatprep.subr.mxu0 0.0
    %583 = vmatpush2.msra.mxu0 0.0
    %584 = vmatprep.subr.mxu0 0.0
    %585 = vmatpush2.msra.mxu0 0.0
    %586 = vmatprep.subr.mxu0 0.0
    %587 = vmatpush2.msra.mxu0 0.0
    %588 = vmatprep.subr.mxu0 0.0
    %589 = vmatpush2.msra.mxu0 0.0
    %590 = vmatprep.subr.mxu0 0.0
    %591 = vmatpush2.msra.mxu0 0.0
    %592 = vmatprep.subr.mxu0 0.0
    %593 = vmatpush2.msra.mxu0 0.0
    %594 = vmatprep.subr.mxu0 0.0
    %595 = vmatpush2.msra.mxu0 0.0
    %596 = vmatprep.subr.mxu0 0.0
    %597 = vmatpush2.msra.mxu0 0.0
    %598 = vmatprep.mubr.f32.mxu0 0.0
    %599 = vmatmul.mubr.f32.gmra.mxu0 %v523
    %v600 = vpop.f32.mrf.mxu0
    %v601 = vadd.f32 0.0, %v600
    %v602 = vpop.f32.mrf.mxu0
    %603 = vmatprep.mubr.f32.mxu0 0.0
    %604 = vmatmul.mubr.f32.gmra.mxu0 %v526
    %v605 = vpop.f32.mrf.mxu0
    %v606 = vadd.f32 0.0, %v605
    %v607 = vpop.f32.mrf.mxu0
    %608 = vmatprep.mubr.f32.mxu0 0.0
    %609 = vmatmul.mubr.f32.gmra.mxu0 %v529
    %v610 = vpop.f32.mrf.mxu0
    %v611 = vadd.f32 0.0, %v610
    %v612 = vpop.f32.mrf.mxu0
    %613 = vmatprep.mubr.f32.mxu0 0.0
    %614 = vmatmul.mubr.f32.gmra.mxu0 %v532
    %v615 = vpop.f32.mrf.mxu0
    %v616 = vadd.f32 0.0, %v615
    %v617 = vpop.f32.mrf.mxu0
    %618 = vdwg.mxu0
    %v619 = vlaneseq
    %v620 = vshrl.u32 %v619, 7
    %v621 = vsub.s32 0, %v620
    %v622 = vrot.slane %v520, %v621
    %v623 = vadd.f32 %v601, %v622
    %v624 = vadd.f32 %v606, %v622
    %v625 = vadd.f32 %v611, %v622
    %v626 = vadd.f32 %v616, %v622
    %v627 = vlaneseq
    %v628 = vshrl.u32 %v627, 7
    %v629 = vsub.s32 1, %v628
    %v630 = vrot.slane %v520, %v629
    %632 = vrot.lane.b32.xlu0 %v630, 32
    %v633 = vpop.permute.xlu0 %632
    %v635 = vadd.f32 %v601, %v633
    %v636 = vadd.f32 %v606, %v633
    %v637 = vadd.f32 %v611, %v633
    %v638 = vadd.f32 %v616, %v633
    %v639 = vlaneseq
    %v640 = vshrl.u32 %v639, 7
    %v641 = vsub.s32 2, %v640
    %v642 = vrot.slane %v520, %v641
    %644 = vrot.lane.b32.xlu0 %v642, 64
    %v645 = vpop.permute.xlu0 %644
    %v647 = vadd.f32 %v601, %v645
    %v648 = vadd.f32 %v606, %v645
    %v649 = vadd.f32 %v611, %v645
    %v650 = vadd.f32 %v616, %v645
    %s651 = scalar_lea.vmem [#allocation2], 4
    %v652 = vld [vmem:[%s651] sm:$0xf]
    %v653 = vlaneseq
    %v654 = vshrl.u32 %v653, 7
    %v655 = vsub.s32 3, %v654
    %v656 = vrot.slane %v520, %v655
    %v657 = vmul.f32 %v656, %v652
    %v658 = vadd.f32 %v623, %v657
    %v659 = vxor.u32 %v658, 2147483648
    %v660 = vmul.f32 %v659, 1.442695
    %v661 = vpow.pop %v660
    %v662 = vadd.f32 %v661, 1.0
    %v663 = vrcp.pop %v662
    %v664 = vmul.f32 1.0, %v663
    %v665 = vlaneseq
    %v666 = vshrl.u32 %v665, 7
    %v667 = vsub.s32 4, %v666
    %v668 = vrot.slane %v520, %v667
    %v669 = vmul.f32 %v668, %v652
    %671 = vrot.lane.b32.xlu0 %v669, 32
    %v672 = vpop.permute.xlu0 %671
    %v674 = vadd.f32 %v635, %v672
    %v675 = vtanh.pop %v674
    %v676 = vadd.f32 %v675, 1.0
    %v677 = vmul.f32 %v664, %v652
    %v678 = vsub.f32 1.0, %v664
    %680 = vrot.lane.b32.xlu0 %v652, 32
    %v681 = vpop.permute.xlu0 %680
    %v683 = vmul.f32 %v676, %v681
    %685 = vrot.lane.b32.xlu0 %v683, 32
    %v686 = vpop.permute.xlu0 %685
    %v688 = vadd.f32 %v647, %v686
    %v689 = vtanh.pop %v688
    %691 = vrot.lane.b32.xlu0 %v689, 64
    %v692 = vpop.permute.xlu0 %691
    %v694 = vmul.f32 %v678, %v692
    %v695 = vadd.f32 %v677, %v694
    %v696 = vmul.f32 %v656, %v695
    %v698 = vrot.slane %v696, 4
    %v700 = vadd.f32 %v623, %v698
    %v701 = vxor.u32 %v700, 2147483648
    %v702 = vmul.f32 %v701, 1.442695
    %v703 = vpow.pop %v702
    %v704 = vadd.f32 %v703, 1.0
    %v705 = vrcp.pop %v704
    %v706 = vmul.f32 1.0, %v705
    %v707 = vmul.f32 %v668, %v695
    %v709 = vrot.slane %v707, 4
    %710 = vrot.lane.b32.xlu0 %v709, 32
    %v711 = vpop.permute.xlu0 %710
    %v713 = vadd.f32 %v635, %v711
    %v714 = vtanh.pop %v713
    %v715 = vadd.f32 %v714, 1.0
    %v717 = vrot.slane %v695, 4
    %v719 = vmul.f32 %v706, %v717
    %v720 = vsub.f32 1.0, %v706
    %721 = vrot.lane.b32.xlu0 %v717, 32
    %v722 = vpop.permute.xlu0 %721
    %v724 = vmul.f32 %v715, %v722
    %726 = vrot.lane.b32.xlu0 %v724, 32
    %v727 = vpop.permute.xlu0 %726
    %v729 = vadd.f32 %v647, %v727
    %v730 = vtanh.pop %v729
    %732 = vrot.lane.b32.xlu0 %v730, 64
    %v733 = vpop.permute.xlu0 %732
    %v735 = vmul.f32 %v720, %v733
    %v736 = vadd.f32 %v719, %v735
    %v737 = vmul.f32 %v656, %v736
    %v739 = vrot.slane %v737, 4
    %v741 = vadd.f32 %v624, %v739
    %v742 = vxor.u32 %v741, 2147483648
    %v743 = vmul.f32 %v742, 1.442695
    %v744 = vpow.pop %v743
    %v745 = vadd.f32 %v744, 1.0
    %v746 = vrcp.pop %v745
    %v747 = vmul.f32 1.0, %v746
    %v748 = vmul.f32 %v668, %v736
    %v750 = vrot.slane %v748, 4
    %751 = vrot.lane.b32.xlu0 %v750, 32
    %v752 = vpop.permute.xlu0 %751
    %v754 = vadd.f32 %v636, %v752
    %v755 = vtanh.pop %v754
    %v756 = vadd.f32 %v755, 1.0
    %v758 = vrot.slane %v736, 4
    %v760 = vmul.f32 %v747, %v758
    %v761 = vsub.f32 1.0, %v747
    %762 = vrot.lane.b32.xlu0 %v758, 32
    %v763 = vpop.permute.xlu0 %762
    %v765 = vmul.f32 %v756, %v763
    %767 = vrot.lane.b32.xlu0 %v765, 32
    %v768 = vpop.permute.xlu0 %767
    %v770 = vadd.f32 %v648, %v768
    %v771 = vtanh.pop %v770
    %773 = vrot.lane.b32.xlu0 %v771, 64
    %v774 = vpop.permute.xlu0 %773
    %v776 = vmul.f32 %v761, %v774
    %v777 = vadd.f32 %v760, %v776
    %v778 = vmul.f32 %v656, %v777
    %v780 = vrot.slane %v778, 4
    %v782 = vadd.f32 %v624, %v780
    %v783 = vxor.u32 %v782, 2147483648
    %v784 = vmul.f32 %v783, 1.442695
    %v785 = vpow.pop %v784
    %v786 = vadd.f32 %v785, 1.0
    %v787 = vrcp.pop %v786
    %v788 = vmul.f32 1.0, %v787
    %v789 = vmul.f32 %v668, %v777
    %v791 = vrot.slane %v789, 4
    %792 = vrot.lane.b32.xlu0 %v791, 32
    %v793 = vpop.permute.xlu0 %792
    %v795 = vadd.f32 %v636, %v793
    %v796 = vtanh.pop %v795
    %v797 = vadd.f32 %v796, 1.0
    %v799 = vrot.slane %v777, 4
    %v801 = vmul.f32 %v788, %v799
    %v802 = vsub.f32 1.0, %v788
    %803 = vrot.lane.b32.xlu0 %v799, 32
    %v804 = vpop.permute.xlu0 %803
    %v806 = vmul.f32 %v797, %v804
    %808 = vrot.lane.b32.xlu0 %v806, 32
    %v809 = vpop.permute.xlu0 %808
    %v811 = vadd.f32 %v648, %v809
    %v812 = vtanh.pop %v811
    %814 = vrot.lane.b32.xlu0 %v812, 64
    %v815 = vpop.permute.xlu0 %814
    %v817 = vmul.f32 %v802, %v815
    %v818 = vadd.f32 %v801, %v817
    %v819 = vmul.f32 %v656, %v818
    %v821 = vrot.slane %v819, 4
    %v823 = vadd.f32 %v625, %v821
    %v824 = vxor.u32 %v823, 2147483648
    %v825 = vmul.f32 %v824, 1.442695
    %v826 = vpow.pop %v825
    %v827 = vadd.f32 %v826, 1.0
    %v828 = vrcp.pop %v827
    %v829 = vmul.f32 1.0, %v828
    %v830 = vmul.f32 %v668, %v818
    %v832 = vrot.slane %v830, 4
    %833 = vrot.lane.b32.xlu0 %v832, 32
    %v834 = vpop.permute.xlu0 %833
    %v836 = vadd.f32 %v637, %v834
    %v837 = vtanh.pop %v836
    %v838 = vadd.f32 %v837, 1.0
    %v840 = vrot.slane %v818, 4
    %v842 = vmul.f32 %v829, %v840
    %v843 = vsub.f32 1.0, %v829
    %844 = vrot.lane.b32.xlu0 %v840, 32
    %v845 = vpop.permute.xlu0 %844
    %v847 = vmul.f32 %v838, %v845
    %849 = vrot.lane.b32.xlu0 %v847, 32
    %v850 = vpop.permute.xlu0 %849
    %v852 = vadd.f32 %v649, %v850
    %v853 = vtanh.pop %v852
    %855 = vrot.lane.b32.xlu0 %v853, 64
    %v856 = vpop.permute.xlu0 %855
    %v858 = vmul.f32 %v843, %v856
    %v859 = vadd.f32 %v842, %v858
    %v860 = vmul.f32 %v656, %v859
    %v862 = vrot.slane %v860, 4
    %v864 = vadd.f32 %v625, %v862
    %v865 = vxor.u32 %v864, 2147483648
    %v866 = vmul.f32 %v865, 1.442695
    %v867 = vpow.pop %v866
    %v868 = vadd.f32 %v867, 1.0
    %v869 = vrcp.pop %v868
    %v870 = vmul.f32 1.0, %v869
    %v871 = vmul.f32 %v668, %v859
    %v873 = vrot.slane %v871, 4
    %874 = vrot.lane.b32.xlu0 %v873, 32
    %v875 = vpop.permute.xlu0 %874
    %v877 = vadd.f32 %v637, %v875
    %v878 = vtanh.pop %v877
    %v879 = vadd.f32 %v878, 1.0
    %v881 = vrot.slane %v859, 4
    %v883 = vmul.f32 %v870, %v881
    %v884 = vsub.f32 1.0, %v870
    %885 = vrot.lane.b32.xlu0 %v881, 32
    %v886 = vpop.permute.xlu0 %885
    %v888 = vmul.f32 %v879, %v886
    %890 = vrot.lane.b32.xlu0 %v888, 32
    %v891 = vpop.permute.xlu0 %890
    %v893 = vadd.f32 %v649, %v891
    %v894 = vtanh.pop %v893
    %896 = vrot.lane.b32.xlu0 %v894, 64
    %v897 = vpop.permute.xlu0 %896
    %v899 = vmul.f32 %v884, %v897
    %v900 = vadd.f32 %v883, %v899
    %v901 = vmul.f32 %v656, %v900
    %v903 = vrot.slane %v901, 4
    %v905 = vadd.f32 %v626, %v903
    %v906 = vxor.u32 %v905, 2147483648
    %v907 = vmul.f32 %v906, 1.442695
    %v908 = vpow.pop %v907
    %v909 = vadd.f32 %v908, 1.0
    %v910 = vrcp.pop %v909
    %v911 = vmul.f32 1.0, %v910
    %v912 = vmul.f32 %v668, %v900
    %v914 = vrot.slane %v912, 4
    %915 = vrot.lane.b32.xlu0 %v914, 32
    %v916 = vpop.permute.xlu0 %915
    %v918 = vadd.f32 %v638, %v916
    %v919 = vtanh.pop %v918
    %v920 = vadd.f32 %v919, 1.0
    %v922 = vrot.slane %v900, 4
    %v924 = vmul.f32 %v911, %v922
    %v925 = vsub.f32 1.0, %v911
    %926 = vrot.lane.b32.xlu0 %v922, 32
    %v927 = vpop.permute.xlu0 %926
    %v929 = vmul.f32 %v920, %v927
    %931 = vrot.lane.b32.xlu0 %v929, 32
    %v932 = vpop.permute.xlu0 %931
    %v934 = vadd.f32 %v650, %v932
    %v935 = vtanh.pop %v934
    %937 = vrot.lane.b32.xlu0 %v935, 64
    %v938 = vpop.permute.xlu0 %937
    %v940 = vmul.f32 %v925, %v938
    %v941 = vadd.f32 %v924, %v940
    %v942 = vmul.f32 %v656, %v941
    %v944 = vrot.slane %v942, 4
    %v946 = vadd.f32 %v626, %v944
    %v947 = vxor.u32 %v946, 2147483648
    %v948 = vmul.f32 %v947, 1.442695
    %v949 = vpow.pop %v948
    %v950 = vadd.f32 %v949, 1.0
    %v951 = vrcp.pop %v950
    %v952 = vmul.f32 1.0, %v951
    %v953 = vmul.f32 %v668, %v941
    %v955 = vrot.slane %v953, 4
    %956 = vrot.lane.b32.xlu0 %v955, 32
    %v957 = vpop.permute.xlu0 %956
    %v959 = vadd.f32 %v638, %v957
    %v960 = vtanh.pop %v959
    %v961 = vadd.f32 %v960, 1.0
    %v963 = vrot.slane %v941, 4
    %v965 = vmul.f32 %v952, %v963
    %v966 = vsub.f32 1.0, %v952
    %967 = vrot.lane.b32.xlu0 %v963, 32
    %v968 = vpop.permute.xlu0 %967
    %v970 = vmul.f32 %v961, %v968
    %972 = vrot.lane.b32.xlu0 %v970, 32
    %v973 = vpop.permute.xlu0 %972
    %v975 = vadd.f32 %v650, %v973
    %v976 = vtanh.pop %v975
    %978 = vrot.lane.b32.xlu0 %v976, 64
    %v979 = vpop.permute.xlu0 %978
    %v981 = vmul.f32 %v966, %v979
    %v982 = vadd.f32 %v965, %v981
    %983 = vst.msk [vmem:[%s651 - $0x4] sm:$0xf0] %vm509, %v982
    %v984 = vsel %vm511, %v695, %v736
    %v985 = vsel %vm511, %v777, %v818
    %v986 = vsel %vm511, %v859, %v900
    %v987 = vsel %vm511, %v941, %v982
    // Predicated region
    $region38: #{tpu_custom_call.1} parent=1 // pred_check
      %p988 = pneg %p32
    $region39: #{tpu_custom_call.1} parent=1 // pred_check_branch
      %990 = sbr.rel (%p988) target = $region41
    $region40: #{tpu_custom_call.1} parent=1 // pred_region
      %991 = vst.msk [vmem:[#allocation3 - $0x4] sm:$0xf0] %vm509, %v508
      %s992 = scalar_lea.vmem [#allocation3], 4
      %993 = vst.msk [vmem:[%s992 - $0x4] sm:$0xf0] %vm509, %v982
    $region41: #{tpu_custom_call.1} parent=1 // pred_fallthru
      _
    %v994 = vld [vmem:[%s6] sm:$0xff]
    %v995 = vld [vmem:[%s6 + $0x8] sm:$0xff]
    %v996 = vld [vmem:[%s6 + $0x10] sm:$0xff]
    %v997 = vld [vmem:[%s6 + $0x18] sm:$0xff]
    %v998 = vld [vmem:[%s7] sm:$0x1]
    %v1000 = vlaneseq
    %v1001 = vshrl.u32 %v1000, 7
    %v1002 = vsub.s32 0, %v1001
    %v1003 = vrot.slane %v998, %v1002
    %v1006 = vsel %vm521, %v984, 0
    %v1009 = vsel %vm521, %v985, 0
    %v1012 = vsel %vm521, %v986, 0
    %v1015 = vsel %vm521, %v987, 0
    %1017 = vmatprep.subr.mxu0 0.0
    %1018 = vmatpush1.msra.mxu0 0.0
    %1019 = vmatprep.subr.mxu0 0.0
    %1020 = vmatpush1.msra.mxu0 0.0
    %1021 = vmatprep.subr.mxu0 0.0
    %1022 = vmatpush1.msra.mxu0 0.0
    %1023 = vmatprep.subr.mxu0 0.0
    %1024 = vmatpush1.msra.mxu0 0.0
    %1025 = vmatprep.subr.mxu0 0.0
    %1026 = vmatpush1.msra.mxu0 0.0
    %1027 = vmatprep.subr.mxu0 0.0
    %1028 = vmatpush1.msra.mxu0 0.0
    %1029 = vmatprep.subr.mxu0 0.0
    %1030 = vmatpush1.msra.mxu0 0.0
    %1031 = vmatprep.subr.mxu0 0.0
    %1032 = vmatpush1.msra.mxu0 0.0
    %1033 = vmatprep.subr.mxu0 0.0
    %1034 = vmatpush1.msra.mxu0 0.0
    %1035 = vmatprep.subr.mxu0 0.0
    %1036 = vmatpush1.msra.mxu0 0.0
    %1037 = vmatprep.subr.mxu0 0.0
    %1038 = vmatpush1.msra.mxu0 0.0
    %1039 = vmatprep.subr.mxu0 0.0
    %1040 = vmatpush1.msra.mxu0 0.0
    %1041 = vmatprep.subr.mxu0 0.0
    %1042 = vmatpush1.msra.mxu0 %v997
    %1043 = vmatprep.subr.mxu0 0.0
    %1044 = vmatpush1.msra.mxu0 %v996
    %1045 = vmatprep.subr.mxu0 0.0
    %1046 = vmatpush1.msra.mxu0 %v995
    %1047 = vmatprep.subr.mxu0 0.0
    %1048 = vmatpush1.msra.mxu0 %v994
    %1049 = vmatprep.subr.mxu0 0.0
    %1050 = vmatpush2.msra.mxu0 0.0
    %1051 = vmatprep.subr.mxu0 0.0
    %1052 = vmatpush2.msra.mxu0 0.0
    %1053 = vmatprep.subr.mxu0 0.0
    %1054 = vmatpush2.msra.mxu0 0.0
    %1055 = vmatprep.subr.mxu0 0.0
    %1056 = vmatpush2.msra.mxu0 0.0
    %1057 = vmatprep.subr.mxu0 0.0
    %1058 = vmatpush2.msra.mxu0 0.0
    %1059 = vmatprep.subr.mxu0 0.0
    %1060 = vmatpush2.msra.mxu0 0.0
    %1061 = vmatprep.subr.mxu0 0.0
    %1062 = vmatpush2.msra.mxu0 0.0
    %1063 = vmatprep.subr.mxu0 0.0
    %1064 = vmatpush2.msra.mxu0 0.0
    %1065 = vmatprep.subr.mxu0 0.0
    %1066 = vmatpush2.msra.mxu0 0.0
    %1067 = vmatprep.subr.mxu0 0.0
    %1068 = vmatpush2.msra.mxu0 0.0
    %1069 = vmatprep.subr.mxu0 0.0
    %1070 = vmatpush2.msra.mxu0 0.0
    %1071 = vmatprep.subr.mxu0 0.0
    %1072 = vmatpush2.msra.mxu0 0.0
    %1073 = vmatprep.subr.mxu0 0.0
    %1074 = vmatpush2.msra.mxu0 0.0
    %1075 = vmatprep.subr.mxu0 0.0
    %1076 = vmatpush2.msra.mxu0 0.0
    %1077 = vmatprep.subr.mxu0 0.0
    %1078 = vmatpush2.msra.mxu0 0.0
    %1079 = vmatprep.subr.mxu0 0.0
    %1080 = vmatpush2.msra.mxu0 0.0
    %1081 = vmatprep.mubr.f32.mxu0 0.0
    %1082 = vmatmul.mubr.f32.gmra.mxu0 %v1006
    %v1083 = vpop.f32.mrf.mxu0
    %v1084 = vadd.f32 %v1003, %v1083
    %v1085 = vpop.f32.mrf.mxu0
    %1086 = vmatprep.mubr.f32.mxu0 0.0
    %1087 = vmatmul.mubr.f32.gmra.mxu0 %v1009
    %v1088 = vpop.f32.mrf.mxu0
    %v1089 = vadd.f32 %v1003, %v1088
    %v1090 = vpop.f32.mrf.mxu0
    %1091 = vmatprep.mubr.f32.mxu0 0.0
    %1092 = vmatmul.mubr.f32.gmra.mxu0 %v1012
    %v1093 = vpop.f32.mrf.mxu0
    %v1094 = vadd.f32 %v1003, %v1093
    %v1095 = vpop.f32.mrf.mxu0
    %1096 = vmatprep.mubr.f32.mxu0 0.0
    %1097 = vmatmul.mubr.f32.gmra.mxu0 %v1015
    %v1098 = vpop.f32.mrf.mxu0
    %v1099 = vadd.f32 %v1003, %v1098
    %v1100 = vpop.f32.mrf.mxu0
    %1101 = vdwg.mxu0
    %vm1102 = vcmask 64512
    %1103 = vst.msk [vmem:[%s8] sm:$0xff] %vm1102, %v1084
    %1104 = vst.msk [vmem:[%s8 + $0x8] sm:$0xff] %vm1102, %v1089
    %1105 = vst.msk [vmem:[%s8 + $0x10] sm:$0xff] %vm1102, %v1094
    %1106 = vst.msk [vmem:[%s8 + $0x18] sm:$0xff] %vm1102, %v1099
    // Predicated region
    $region42: #{tpu_custom_call.1} parent=1 // pred_check
      _
    $region43: #{tpu_custom_call.1} parent=1 // pred_check_branch
      %1108 = sbr.rel (0) target = $region45
    $region44: #{tpu_custom_call.1} parent=1 // pred_region
      _
    $region45: #{tpu_custom_call.1} parent=1 // pred_fallthru
      _
    // Predicated region
    $region46: #{tpu_custom_call.1} parent=1 // pred_check
      _
    $region47: #{tpu_custom_call.1} parent=1 // pred_check_branch
      %1110 = sbr.rel (0) target = $region49
    $region48: #{tpu_custom_call.1} parent=1 // pred_region
      %s1112 = ssub.s32 128, 128
      %1113 = vsyncadd [#allocation4], %s1112
      %s1114 = sshll.u32 [#allocation3], 4
      %s1115 = int_to_ptr.vmem [resolvable:$true] %s1114
      %1120 = dma.vmem_to_hbm [thread:$0]  %s1115, 128, %s9, [#allocation4], 64, 64, 4
    $region49: #{tpu_custom_call.1} parent=1 // pred_fallthru
      _
    // Predicated region
    $region50: #{tpu_custom_call.1} parent=1 // pred_check
      _
    $region51: #{tpu_custom_call.1} parent=1 // pred_check_branch
      %1122 = sbr.rel (0) target = $region53
    $region52: #{tpu_custom_call.1} parent=1 // pred_region
      _
    $region53: #{tpu_custom_call.1} parent=1 // pred_fallthru
      _
    // Predicated region
    $region54: #{tpu_custom_call.1} parent=1 // pred_check
      _
    $region55: #{tpu_custom_call.1} parent=1 // pred_check_branch
      %1124 = sbr.rel (0) target = $region57
    $region56: #{tpu_custom_call.1} parent=1 // pred_region
      %1125 = dma.done [#allocation4], 128
    $region57: #{tpu_custom_call.1} parent=1 // pred_fallthru
      _
    %1126 = vsyncpa [#allocation4], 1

</llo_original>
